<compile_context>
chip_gen: v5e
topology: v5e:2x2
jax: 0.10.0
libtpu: 0.0.40
codegen_flags: <defaults>
</compile_context>

<pallas_src>
import functools

import jax
import jax.numpy as jnp
import numpy as np
from jax import lax
from jax.experimental import pallas as pl
from jax.experimental.pallas import tpu as pltpu

LANE = 128
SUBLANE = 8


def _round_up(x, m):
    return ((x + m - 1) // m) * m


def _pad_gate_cols(a, h, hp):
    """Zero-pad each of the 3 gate blocks in the last dim from h to hp."""
    if hp == h:
        return a
    lead = a.shape[:-1]
    a3 = a.reshape(lead + (3, h))
    a3 = jnp.pad(a3, [(0, 0)] * len(lead) + [(0, 0), (0, hp - h)])
    return a3.reshape(lead + (3 * hp,))


def _pick_time_chunk(T, Bp, Hp, target_bytes=4 << 20, max_chunk=64):
    """Largest divisor of T whose i-chunk fits the per-buffer VMEM target."""
    row_bytes = Bp * 3 * Hp * 4
    cap = int(max(1, min(max_chunk, target_bytes // max(row_bytes, 1), T)))
    for d in range(cap, 0, -1):
        if T % d == 0:
            return d
    return T


# -----------------------------------------------------------------------------
# Pallas kernel: streamed time recurrence (fused 3-stream matmul) + epilogue
# -----------------------------------------------------------------------------
def cru_kernel(i_ref, wh_ref, bhn_ref, wfc_ref, bfc_ref,
               out_ref, feat_ref, h_scr, *, batch):
    t_blk = pl.program_id(0)
    Tc, Bp, _ = i_ref.shape          # i chunk: (Tc, Bp, 3Hp)
    Hp = wh_ref.shape[0]             # lane-padded hidden dim

    @pl.when(t_blk == 0)
    def _():
        h_scr[...] = jnp.zeros_like(h_scr)

    wh = wh_ref[...]                                              # (Hp, 3Hp)
    # hoist the (only remaining) bias broadcast out of the loop
    bh_n = jnp.broadcast_to(bhn_ref[...], (Bp, Hp))               # (Bp, Hp)

    def step(t, h):
        i_t = i_ref[t]                                            # (Bp, 3Hp)
        # ONE fused MXU call for the 3 hidden streams: (3Bp,Hp)@(Hp,3Hp)
        g = jnp.dot(h, wh, preferred_element_type=jnp.float32)    # (3Bp, 3Hp)
        i_r = i_t[:, 0:Hp]
        i_z = i_t[:, Hp:2 * Hp]
        i_n = i_t[:, 2 * Hp:3 * Hp]
        new = []
        for s in range(3):                       # sublane-aligned row views
            g_s = g[s * Bp:(s + 1) * Bp]
            h_s = h[s * Bp:(s + 1) * Bp]
            r = jax.nn.sigmoid(i_r + g_s[:, 0:Hp])        # bh_r folded into i
            z = jax.nn.sigmoid(i_z + g_s[:, Hp:2 * Hp])   # bh_z folded into i
            n = jnp.tanh(i_n + r * (g_s[:, 2 * Hp:3 * Hp] + bh_n))
            new.append((1.0 - z) * n + z * h_s)
        return jnp.concatenate(new, axis=0)

    h_scr[...] = lax.fori_loop(0, Tc, step, h_scr[...], unroll=min(Tc, 8))

    @pl.when(t_blk == pl.num_programs(0) - 1)
    def _():
        h_fin = h_scr[...]                                        # (3Bp, Hp)
        row = lax.broadcasted_iota(jnp.int32, (Bp, Hp), 0)
        bmask = row < batch                       # mask out padded batch rows
        inv_b = 1.0 / batch
        feats = []
        ssum = jnp.zeros((Bp, Hp), jnp.float32)
        for s in range(3):
            h_s = h_fin[s * Bp:(s + 1) * Bp]
            feats.append(
                jnp.sum(jnp.where(bmask, h_s, 0.0), axis=0, keepdims=True)
                * inv_b)
            ssum = ssum + h_s
        feat_ref[...] = jnp.concatenate(feats, axis=0)            # (3, Hp)
        y = (jnp.dot(ssum, wfc_ref[...], preferred_element_type=jnp.float32)
             + bfc_ref[...])
        out_ref[...] = jnp.where(y > 0, y, jnp.exp(jnp.minimum(y, 0.0)) - 1.0)


# -----------------------------------------------------------------------------
# Wrapper
# -----------------------------------------------------------------------------
@functools.partial(jax.jit, static_argnames=("time_chunk",))
def cru_forward(x_btd, wx, bx, wh, bh, wfc, bfc, *, time_chunk=None):
    """x_btd: (B, T, in_dim) f32 -> (out (B, out_dim), feature (3, hid_dim))."""
    B, T, _ = x_btd.shape
    H = wh.shape[0]
    Od = wfc.shape[1]
    Hp = _round_up(H, LANE)
    Odp = _round_up(Od, LANE)
    Bp = _round_up(B, SUBLANE)

    # (1) Fold gate padding + loop-invariant biases into the tiny weights so
    #     the hoisted input projection directly emits padded, bias-folded i.
    wx_p = _pad_gate_cols(wx, H, Hp)                                # (D, 3Hp)
    bh_r, bh_z, bh_n = bh[:, 0:H], bh[:, H:2 * H], bh[:, 2 * H:3 * H]
    bx_fold = jnp.concatenate(
        [bx[:, 0:H] + bh_r, bx[:, H:2 * H] + bh_z, bx[:, 2 * H:3 * H]],
        axis=-1)
    bx_fold = _pad_gate_cols(bx_fold, H, Hp)                        # (1, 3Hp)
    bhn_p = jnp.pad(bh_n, ((0, 0), (0, Hp - H)))                    # (1, Hp)
    wh_p = _pad_gate_cols(jnp.pad(wh, ((0, Hp - H), (0, 0))), H, Hp)  # (Hp,3Hp)
    wfc_p = jnp.pad(wfc, ((0, Hp - H), (0, Odp - Od)))              # (Hp, Odp)
    bfc_p = jnp.pad(bfc, ((0, 0), (0, Odp - Od)))                   # (1, Odp)

    # (2) Input projection hoisted out of the recurrence; time-major layout is
    #     fused into the matmul output; batch padded to a sublane multiple.
    x_p = jnp.pad(x_btd, ((0, Bp - B), (0, 0), (0, 0)))
    i_all = jnp.einsum('btd,dh->tbh', x_p, wx_p) + bx_fold          # (T,Bp,3Hp)

    # (3) Stream i over T chunks; hidden state carried in VMEM scratch.
    Tc = time_chunk if time_chunk is not None else _pick_time_chunk(T, Bp, Hp)
    assert T % Tc == 0, "time_chunk must divide T"
    nT = T // Tc

    itemsize = 4
    chunk_bytes = Tc * Bp * 3 * Hp * itemsize
    weight_bytes = (Hp * 3 * Hp + Hp + Hp * Odp + Odp) * itemsize
    misc_bytes = (3 * Bp * Hp + Bp * Odp + 3 * Hp) * itemsize
    vmem_limit = min(
        int(2 * (2 * chunk_bytes + weight_bytes + misc_bytes)) + (4 << 20),
        100 << 20)

    grid_spec = pltpu.PrefetchScalarGridSpec(
        num_scalar_prefetch=0,
        grid=(nT,),
        in_specs=[
            pl.BlockSpec((Tc, Bp, 3 * Hp), lambda t: (t, 0, 0)),   # streamed i
            pl.BlockSpec((Hp, 3 * Hp), lambda t: (0, 0)),          # wh (resident)
            pl.BlockSpec((1, Hp), lambda t: (0, 0)),               # bh_n
            pl.BlockSpec((Hp, Odp), lambda t: (0, 0)),             # wfc
            pl.BlockSpec((1, Odp), lambda t: (0, 0)),              # bfc
        ],
        out_specs=(
            pl.BlockSpec((Bp, Odp), lambda t: (0, 0)),
            pl.BlockSpec((3, Hp), lambda t: (0, 0)),
        ),
        scratch_shapes=[pltpu.VMEM((3 * Bp, Hp), jnp.float32)],     # carried h
    )

    out_p, feat_p = pl.pallas_call(
        functools.partial(cru_kernel, batch=B),
        out_shape=(jax.ShapeDtypeStruct((Bp, Odp), jnp.float32),
                   jax.ShapeDtypeStruct((3, Hp), jnp.float32)),
        grid_spec=grid_spec,
        compiler_params=pltpu.CompilerParams(
            dimension_semantics=("arbitrary",),     # T axis is a recurrence
            vmem_limit_bytes=vmem_limit),
    )(i_all, wh_p, bhn_p, wfc_p, bfc_p)

    return out_p[:B, :Od], feat_p[:, :H]


# -----------------------------------------------------------------------------
# Pure-JAX reference (same math) for correctness check
# -----------------------------------------------------------------------------
def cru_reference(x_btd, wx, bx, wh, bh, wfc, bfc):
    B, T, _ = x_btd.shape
    Hd = wh.shape[0]
    h = jnp.zeros((3, B, Hd), jnp.float32)
    for t in range(T):
        i = x_btd[:, t, :] @ wx + bx
        i_r, i_z, i_n = jnp.split(i, 3, axis=-1)
        new = []
        for s in range(3):
            g = h[s] @ wh + bh
            g_r, g_z, g_n = jnp.split(g, 3, axis=-1)
            r = jax.nn.sigmoid(i_r + g_r)
            z = jax.nn.sigmoid(i_z + g_z)
            n = jnp.tanh(i_n + r * g_n)
            new.append((1.0 - z) * n + z * h[s])
        h = jnp.stack(new, axis=0)
    feature = jnp.mean(h, axis=1)
    ssum = jnp.sum(h, axis=0)
    y = ssum @ wfc + bfc
    out = jnp.where(y > 0, y, jnp.exp(jnp.minimum(y, 0.0)) - 1.0)
    return out, feature


# -----------------------------------------------------------------------------
# Deterministic parameter init (PyTorch-Linear-style uniform)
# -----------------------------------------------------------------------------
def init_params(key, in_dim, hid_dim, out_dim):
    ks = jax.random.split(key, 6)

    def u(k, shape, fan_in):
        lim = 1.0 / np.sqrt(fan_in)
        return jax.random.uniform(k, shape, jnp.float32, -lim, lim)

    wx = u(ks[0], (in_dim, 3 * hid_dim), in_dim)
    bx = u(ks[1], (1, 3 * hid_dim), in_dim)
    wh = u(ks[2], (hid_dim, 3 * hid_dim), hid_dim)
    bh = u(ks[3], (1, 3 * hid_dim), hid_dim)
    wfc = u(ks[4], (hid_dim, out_dim), hid_dim)  # fc: hid_dim*num_layers, num_layers=1
    bfc = u(ks[5], (1, out_dim), hid_dim)
    return wx, bx, wh, bh, wfc, bfc


if __name__ == "__main__":
    B, T, IN_DIM, HID_DIM, OUT_DIM = 4, 8, 8, 32, 16  # num_layers = 1

    key = jax.random.PRNGKey(0)
    k_x, k_p = jax.random.split(key)
    x = jax.random.normal(k_x, (B, T, IN_DIM), jnp.float32)
    params = init_params(k_p, IN_DIM, HID_DIM, OUT_DIM)

    # time_chunk=4 -> grid=(2,): exercises the chunked-streaming / carried-
    # hidden-state path that bounds VMEM for realistic T.
    out, feature = cru_forward(x, *params, time_chunk=4)
    jax.block_until_ready((out, feature))

    out_ref, feat_ref = cru_reference(x, *params)
    np.testing.assert_allclose(np.asarray(out), np.asarray(out_ref),
                               rtol=1e-4, atol=1e-4)
    np.testing.assert_allclose(np.asarray(feature), np.asarray(feat_ref),
                               rtol=1e-4, atol=1e-4)

    assert out.shape == (B, OUT_DIM) and feature.shape == (3, HID_DIM)
    print("KERNEL_OK")
</pallas_src>

<mosaic_0001>
module attributes {stable_mosaic.version = 11 : i64} {
  func.func @cru_kernel(%arg0: i32, %arg1: memref<4x8x384xf32, #tpu.memory_space<vmem>>, %arg2: memref<128x384xf32, #tpu.memory_space<vmem>>, %arg3: memref<1x128xf32, #tpu.memory_space<vmem>>, %arg4: memref<128x128xf32, #tpu.memory_space<vmem>>, %arg5: memref<1x128xf32, #tpu.memory_space<vmem>>, %arg6: memref<8x128xf32, #tpu.memory_space<vmem>>, %arg7: memref<3x128xf32, #tpu.memory_space<vmem>>, %arg8: memref<24x128xf32, #tpu.memory_space<vmem>>) attributes {dimension_semantics = [#tpu.dimension_semantics<arbitrary>], iteration_bounds = array<i64: 2>, scalar_prefetch = 0 : i64, scratch_operands = 1 : i64, tpu.core_type = #tpu.core_type<tc>, window_params = [{transform_indices = @transform_0, window_bounds = array<i64: 4, 8, 384>}, {pipeline_mode = #tpu.pipeline_mode<synchronous>, transform_indices = @transform_1, window_bounds = array<i64: 128, 384>}, {pipeline_mode = #tpu.pipeline_mode<synchronous>, transform_indices = @transform_2, window_bounds = array<i64: 1, 128>}, {pipeline_mode = #tpu.pipeline_mode<synchronous>, transform_indices = @transform_3, window_bounds = array<i64: 128, 128>}, {pipeline_mode = #tpu.pipeline_mode<synchronous>, transform_indices = @transform_4, window_bounds = array<i64: 1, 128>}, {pipeline_mode = #tpu.pipeline_mode<synchronous>, transform_indices = @transform_5, window_bounds = array<i64: 8, 128>}, {pipeline_mode = #tpu.pipeline_mode<synchronous>, transform_indices = @transform_6, window_bounds = array<i64: 3, 128>}]} {
    %c0_i32 = arith.constant 0 : i32
    %0 = arith.cmpi eq, %arg0, %c0_i32 : i32
    %1 = arith.extui %0 : i1 to i32
    %c0_i32_0 = arith.constant 0 : i32
    %2 = arith.cmpi ne, %1, %c0_i32_0 : i32
    scf.if %2 {
      %cst_58 = arith.constant 0.000000e+00 : f32
      %356 = vector.broadcast %cst_58 : f32 to vector<24x128xf32>
      %c0_59 = arith.constant 0 : index
      %c0_60 = arith.constant 0 : index
      %357 = vector.load %arg8[%c0_59, %c0_60] : memref<24x128xf32, #tpu.memory_space<vmem>>, vector<24x128xf32>
      tpu.vector_store %arg8[%c0_59, %c0_60], %356 {strides = array<i32>} : memref<24x128xf32, #tpu.memory_space<vmem>>, vector<24x128xf32>,
    } else {
    }
    %c0 = arith.constant 0 : index
    %c0_1 = arith.constant 0 : index
    %3 = vector.load %arg2[%c0, %c0_1] : memref<128x384xf32, #tpu.memory_space<vmem>>, vector<128x384xf32>
    %c0_2 = arith.constant 0 : index
    %c0_3 = arith.constant 0 : index
    %4 = vector.load %arg3[%c0_2, %c0_3] : memref<1x128xf32, #tpu.memory_space<vmem>>, vector<1x128xf32>
    %5 = vector.shape_cast %4 : vector<1x128xf32> to vector<1x128xf32>
    %6 = vector.broadcast %5 : vector<1x128xf32> to vector<8x128xf32>
    %c0_4 = arith.constant 0 : index
    %c0_5 = arith.constant 0 : index
    %7 = vector.load %arg8[%c0_4, %c0_5] : memref<24x128xf32, #tpu.memory_space<vmem>>, vector<24x128xf32>
    %c0_i32_6 = arith.constant 0 : i32
    %8 = arith.index_cast %c0_i32_6 : i32 to index
    %c0_7 = arith.constant 0 : index
    %c0_8 = arith.constant 0 : index
    %9 = vector.load %arg1[%8, %c0_7, %c0_8] : memref<4x8x384xf32, #tpu.memory_space<vmem>>, vector<1x8x384xf32>
    %10 = vector.shape_cast %9 : vector<1x8x384xf32> to vector<8x384xf32>
    %cst = arith.constant dense<0.000000e+00> : vector<24x384xf32>
    %11 = tpu.matmul %7, %3, %cst {dimension_numbers = #tpu.dot_dimension_numbers<[1], [0], [0], [1], [0, 0, 1, 1], [], []>} : vector<24x128xf32>, vector<128x384xf32>, vector<24x384xf32> -> vector<24x384xf32>
    %12 = vector.extract_strided_slice %10 {offsets = [0, 0], sizes = [8, 128], strides = [1, 1]} : vector<8x384xf32> to vector<8x128xf32>
    %13 = vector.extract_strided_slice %10 {offsets = [0, 128], sizes = [8, 128], strides = [1, 1]} : vector<8x384xf32> to vector<8x128xf32>
    %14 = vector.extract_strided_slice %10 {offsets = [0, 256], sizes = [8, 128], strides = [1, 1]} : vector<8x384xf32> to vector<8x128xf32>
    %15 = vector.extract_strided_slice %11 {offsets = [0, 0], sizes = [8, 384], strides = [1, 1]} : vector<24x384xf32> to vector<8x384xf32>
    %16 = vector.extract_strided_slice %7 {offsets = [0, 0], sizes = [8, 128], strides = [1, 1]} : vector<24x128xf32> to vector<8x128xf32>
    %17 = vector.extract_strided_slice %15 {offsets = [0, 0], sizes = [8, 128], strides = [1, 1]} : vector<8x384xf32> to vector<8x128xf32>
    %18 = arith.addf %12, %17 : vector<8x128xf32>
    %19 = arith.negf %18 : vector<8x128xf32>
    %20 = math.exp %19 : vector<8x128xf32>
    %cst_9 = arith.constant 1.000000e+00 : f32
    %21 = vector.broadcast %cst_9 : f32 to vector<8x128xf32>
    %22 = arith.addf %21, %20 : vector<8x128xf32>
    %23 = arith.divf %21, %22 : vector<8x128xf32>
    %24 = vector.extract_strided_slice %15 {offsets = [0, 128], sizes = [8, 128], strides = [1, 1]} : vector<8x384xf32> to vector<8x128xf32>
    %25 = arith.addf %13, %24 : vector<8x128xf32>
    %26 = arith.negf %25 : vector<8x128xf32>
    %27 = math.exp %26 : vector<8x128xf32>
    %cst_10 = arith.constant 1.000000e+00 : f32
    %28 = vector.broadcast %cst_10 : f32 to vector<8x128xf32>
    %29 = arith.addf %28, %27 : vector<8x128xf32>
    %30 = arith.divf %28, %29 : vector<8x128xf32>
    %31 = vector.extract_strided_slice %15 {offsets = [0, 256], sizes = [8, 128], strides = [1, 1]} : vector<8x384xf32> to vector<8x128xf32>
    %32 = arith.addf %31, %6 : vector<8x128xf32>
    %33 = arith.mulf %23, %32 : vector<8x128xf32>
    %34 = arith.addf %14, %33 : vector<8x128xf32>
    %35 = math.tanh %34 : vector<8x128xf32>
    %cst_11 = arith.constant 1.000000e+00 : f32
    %36 = vector.broadcast %cst_11 : f32 to vector<8x128xf32>
    %37 = arith.subf %36, %30 : vector<8x128xf32>
    %38 = arith.mulf %37, %35 : vector<8x128xf32>
    %39 = arith.mulf %30, %16 : vector<8x128xf32>
    %40 = arith.addf %38, %39 : vector<8x128xf32>
    %41 = vector.extract_strided_slice %11 {offsets = [8, 0], sizes = [8, 384], strides = [1, 1]} : vector<24x384xf32> to vector<8x384xf32>
    %42 = vector.extract_strided_slice %7 {offsets = [8, 0], sizes = [8, 128], strides = [1, 1]} : vector<24x128xf32> to vector<8x128xf32>
    %43 = vector.extract_strided_slice %41 {offsets = [0, 0], sizes = [8, 128], strides = [1, 1]} : vector<8x384xf32> to vector<8x128xf32>
    %44 = arith.addf %12, %43 : vector<8x128xf32>
    %45 = arith.negf %44 : vector<8x128xf32>
    %46 = math.exp %45 : vector<8x128xf32>
    %cst_12 = arith.constant 1.000000e+00 : f32
    %47 = vector.broadcast %cst_12 : f32 to vector<8x128xf32>
    %48 = arith.addf %47, %46 : vector<8x128xf32>
    %49 = arith.divf %47, %48 : vector<8x128xf32>
    %50 = vector.extract_strided_slice %41 {offsets = [0, 128], sizes = [8, 128], strides = [1, 1]} : vector<8x384xf32> to vector<8x128xf32>
    %51 = arith.addf %13, %50 : vector<8x128xf32>
    %52 = arith.negf %51 : vector<8x128xf32>
    %53 = math.exp %52 : vector<8x128xf32>
    %cst_13 = arith.constant 1.000000e+00 : f32
    %54 = vector.broadcast %cst_13 : f32 to vector<8x128xf32>
    %55 = arith.addf %54, %53 : vector<8x128xf32>
    %56 = arith.divf %54, %55 : vector<8x128xf32>
    %57 = vector.extract_strided_slice %41 {offsets = [0, 256], sizes = [8, 128], strides = [1, 1]} : vector<8x384xf32> to vector<8x128xf32>
    %58 = arith.addf %57, %6 : vector<8x128xf32>
    %59 = arith.mulf %49, %58 : vector<8x128xf32>
    %60 = arith.addf %14, %59 : vector<8x128xf32>
    %61 = math.tanh %60 : vector<8x128xf32>
    %cst_14 = arith.constant 1.000000e+00 : f32
    %62 = vector.broadcast %cst_14 : f32 to vector<8x128xf32>
    %63 = arith.subf %62, %56 : vector<8x128xf32>
    %64 = arith.mulf %63, %61 : vector<8x128xf32>
    %65 = arith.mulf %56, %42 : vector<8x128xf32>
    %66 = arith.addf %64, %65 : vector<8x128xf32>
    %67 = vector.extract_strided_slice %11 {offsets = [16, 0], sizes = [8, 384], strides = [1, 1]} : vector<24x384xf32> to vector<8x384xf32>
    %68 = vector.extract_strided_slice %7 {offsets = [16, 0], sizes = [8, 128], strides = [1, 1]} : vector<24x128xf32> to vector<8x128xf32>
    %69 = vector.extract_strided_slice %67 {offsets = [0, 0], sizes = [8, 128], strides = [1, 1]} : vector<8x384xf32> to vector<8x128xf32>
    %70 = arith.addf %12, %69 : vector<8x128xf32>
    %71 = arith.negf %70 : vector<8x128xf32>
    %72 = math.exp %71 : vector<8x128xf32>
    %cst_15 = arith.constant 1.000000e+00 : f32
    %73 = vector.broadcast %cst_15 : f32 to vector<8x128xf32>
    %74 = arith.addf %73, %72 : vector<8x128xf32>
    %75 = arith.divf %73, %74 : vector<8x128xf32>
    %76 = vector.extract_strided_slice %67 {offsets = [0, 128], sizes = [8, 128], strides = [1, 1]} : vector<8x384xf32> to vector<8x128xf32>
    %77 = arith.addf %13, %76 : vector<8x128xf32>
    %78 = arith.negf %77 : vector<8x128xf32>
    %79 = math.exp %78 : vector<8x128xf32>
    %cst_16 = arith.constant 1.000000e+00 : f32
    %80 = vector.broadcast %cst_16 : f32 to vector<8x128xf32>
    %81 = arith.addf %80, %79 : vector<8x128xf32>
    %82 = arith.divf %80, %81 : vector<8x128xf32>
    %83 = vector.extract_strided_slice %67 {offsets = [0, 256], sizes = [8, 128], strides = [1, 1]} : vector<8x384xf32> to vector<8x128xf32>
    %84 = arith.addf %83, %6 : vector<8x128xf32>
    %85 = arith.mulf %75, %84 : vector<8x128xf32>
    %86 = arith.addf %14, %85 : vector<8x128xf32>
    %87 = math.tanh %86 : vector<8x128xf32>
    %cst_17 = arith.constant 1.000000e+00 : f32
    %88 = vector.broadcast %cst_17 : f32 to vector<8x128xf32>
    %89 = arith.subf %88, %82 : vector<8x128xf32>
    %90 = arith.mulf %89, %87 : vector<8x128xf32>
    %91 = arith.mulf %82, %68 : vector<8x128xf32>
    %92 = arith.addf %90, %91 : vector<8x128xf32>
    %93 = tpu.concatenate %40, %66, %92 in 0 : vector<8x128xf32>, vector<8x128xf32>, vector<8x128xf32> -> vector<24x128xf32>
    %c1_i32 = arith.constant 1 : i32
    %94 = arith.index_cast %c1_i32 : i32 to index
    %c0_18 = arith.constant 0 : index
    %c0_19 = arith.constant 0 : index
    %95 = vector.load %arg1[%94, %c0_18, %c0_19] : memref<4x8x384xf32, #tpu.memory_space<vmem>>, vector<1x8x384xf32>
    %96 = vector.shape_cast %95 : vector<1x8x384xf32> to vector<8x384xf32>
    %cst_20 = arith.constant dense<0.000000e+00> : vector<24x384xf32>
    %97 = tpu.matmul %93, %3, %cst_20 {dimension_numbers = #tpu.dot_dimension_numbers<[1], [0], [0], [1], [0, 0, 1, 1], [], []>} : vector<24x128xf32>, vector<128x384xf32>, vector<24x384xf32> -> vector<24x384xf32>
    %98 = vector.extract_strided_slice %96 {offsets = [0, 0], sizes = [8, 128], strides = [1, 1]} : vector<8x384xf32> to vector<8x128xf32>
    %99 = vector.extract_strided_slice %96 {offsets = [0, 128], sizes = [8, 128], strides = [1, 1]} : vector<8x384xf32> to vector<8x128xf32>
    %100 = vector.extract_strided_slice %96 {offsets = [0, 256], sizes = [8, 128], strides = [1, 1]} : vector<8x384xf32> to vector<8x128xf32>
    %101 = vector.extract_strided_slice %97 {offsets = [0, 0], sizes = [8, 384], strides = [1, 1]} : vector<24x384xf32> to vector<8x384xf32>
    %102 = vector.extract_strided_slice %93 {offsets = [0, 0], sizes = [8, 128], strides = [1, 1]} : vector<24x128xf32> to vector<8x128xf32>
    %103 = vector.extract_strided_slice %101 {offsets = [0, 0], sizes = [8, 128], strides = [1, 1]} : vector<8x384xf32> to vector<8x128xf32>
    %104 = arith.addf %98, %103 : vector<8x128xf32>
    %105 = arith.negf %104 : vector<8x128xf32>
    %106 = math.exp %105 : vector<8x128xf32>
    %cst_21 = arith.constant 1.000000e+00 : f32
    %107 = vector.broadcast %cst_21 : f32 to vector<8x128xf32>
    %108 = arith.addf %107, %106 : vector<8x128xf32>
    %109 = arith.divf %107, %108 : vector<8x128xf32>
    %110 = vector.extract_strided_slice %101 {offsets = [0, 128], sizes = [8, 128], strides = [1, 1]} : vector<8x384xf32> to vector<8x128xf32>
    %111 = arith.addf %99, %110 : vector<8x128xf32>
    %112 = arith.negf %111 : vector<8x128xf32>
    %113 = math.exp %112 : vector<8x128xf32>
    %cst_22 = arith.constant 1.000000e+00 : f32
    %114 = vector.broadcast %cst_22 : f32 to vector<8x128xf32>
    %115 = arith.addf %114, %113 : vector<8x128xf32>
    %116 = arith.divf %114, %115 : vector<8x128xf32>
    %117 = vector.extract_strided_slice %101 {offsets = [0, 256], sizes = [8, 128], strides = [1, 1]} : vector<8x384xf32> to vector<8x128xf32>
    %118 = arith.addf %117, %6 : vector<8x128xf32>
    %119 = arith.mulf %109, %118 : vector<8x128xf32>
    %120 = arith.addf %100, %119 : vector<8x128xf32>
    %121 = math.tanh %120 : vector<8x128xf32>
    %cst_23 = arith.constant 1.000000e+00 : f32
    %122 = vector.broadcast %cst_23 : f32 to vector<8x128xf32>
    %123 = arith.subf %122, %116 : vector<8x128xf32>
    %124 = arith.mulf %123, %121 : vector<8x128xf32>
    %125 = arith.mulf %116, %102 : vector<8x128xf32>
    %126 = arith.addf %124, %125 : vector<8x128xf32>
    %127 = vector.extract_strided_slice %97 {offsets = [8, 0], sizes = [8, 384], strides = [1, 1]} : vector<24x384xf32> to vector<8x384xf32>
    %128 = vector.extract_strided_slice %93 {offsets = [8, 0], sizes = [8, 128], strides = [1, 1]} : vector<24x128xf32> to vector<8x128xf32>
    %129 = vector.extract_strided_slice %127 {offsets = [0, 0], sizes = [8, 128], strides = [1, 1]} : vector<8x384xf32> to vector<8x128xf32>
    %130 = arith.addf %98, %129 : vector<8x128xf32>
    %131 = arith.negf %130 : vector<8x128xf32>
    %132 = math.exp %131 : vector<8x128xf32>
    %cst_24 = arith.constant 1.000000e+00 : f32
    %133 = vector.broadcast %cst_24 : f32 to vector<8x128xf32>
    %134 = arith.addf %133, %132 : vector<8x128xf32>
    %135 = arith.divf %133, %134 : vector<8x128xf32>
    %136 = vector.extract_strided_slice %127 {offsets = [0, 128], sizes = [8, 128], strides = [1, 1]} : vector<8x384xf32> to vector<8x128xf32>
    %137 = arith.addf %99, %136 : vector<8x128xf32>
    %138 = arith.negf %137 : vector<8x128xf32>
    %139 = math.exp %138 : vector<8x128xf32>
    %cst_25 = arith.constant 1.000000e+00 : f32
    %140 = vector.broadcast %cst_25 : f32 to vector<8x128xf32>
    %141 = arith.addf %140, %139 : vector<8x128xf32>
    %142 = arith.divf %140, %141 : vector<8x128xf32>
    %143 = vector.extract_strided_slice %127 {offsets = [0, 256], sizes = [8, 128], strides = [1, 1]} : vector<8x384xf32> to vector<8x128xf32>
    %144 = arith.addf %143, %6 : vector<8x128xf32>
    %145 = arith.mulf %135, %144 : vector<8x128xf32>
    %146 = arith.addf %100, %145 : vector<8x128xf32>
    %147 = math.tanh %146 : vector<8x128xf32>
    %cst_26 = arith.constant 1.000000e+00 : f32
    %148 = vector.broadcast %cst_26 : f32 to vector<8x128xf32>
    %149 = arith.subf %148, %142 : vector<8x128xf32>
    %150 = arith.mulf %149, %147 : vector<8x128xf32>
    %151 = arith.mulf %142, %128 : vector<8x128xf32>
    %152 = arith.addf %150, %151 : vector<8x128xf32>
    %153 = vector.extract_strided_slice %97 {offsets = [16, 0], sizes = [8, 384], strides = [1, 1]} : vector<24x384xf32> to vector<8x384xf32>
    %154 = vector.extract_strided_slice %93 {offsets = [16, 0], sizes = [8, 128], strides = [1, 1]} : vector<24x128xf32> to vector<8x128xf32>
    %155 = vector.extract_strided_slice %153 {offsets = [0, 0], sizes = [8, 128], strides = [1, 1]} : vector<8x384xf32> to vector<8x128xf32>
    %156 = arith.addf %98, %155 : vector<8x128xf32>
    %157 = arith.negf %156 : vector<8x128xf32>
    %158 = math.exp %157 : vector<8x128xf32>
    %cst_27 = arith.constant 1.000000e+00 : f32
    %159 = vector.broadcast %cst_27 : f32 to vector<8x128xf32>
    %160 = arith.addf %159, %158 : vector<8x128xf32>
    %161 = arith.divf %159, %160 : vector<8x128xf32>
    %162 = vector.extract_strided_slice %153 {offsets = [0, 128], sizes = [8, 128], strides = [1, 1]} : vector<8x384xf32> to vector<8x128xf32>
    %163 = arith.addf %99, %162 : vector<8x128xf32>
    %164 = arith.negf %163 : vector<8x128xf32>
    %165 = math.exp %164 : vector<8x128xf32>
    %cst_28 = arith.constant 1.000000e+00 : f32
    %166 = vector.broadcast %cst_28 : f32 to vector<8x128xf32>
    %167 = arith.addf %166, %165 : vector<8x128xf32>
    %168 = arith.divf %166, %167 : vector<8x128xf32>
    %169 = vector.extract_strided_slice %153 {offsets = [0, 256], sizes = [8, 128], strides = [1, 1]} : vector<8x384xf32> to vector<8x128xf32>
    %170 = arith.addf %169, %6 : vector<8x128xf32>
    %171 = arith.mulf %161, %170 : vector<8x128xf32>
    %172 = arith.addf %100, %171 : vector<8x128xf32>
    %173 = math.tanh %172 : vector<8x128xf32>
    %cst_29 = arith.constant 1.000000e+00 : f32
    %174 = vector.broadcast %cst_29 : f32 to vector<8x128xf32>
    %175 = arith.subf %174, %168 : vector<8x128xf32>
    %176 = arith.mulf %175, %173 : vector<8x128xf32>
    %177 = arith.mulf %168, %154 : vector<8x128xf32>
    %178 = arith.addf %176, %177 : vector<8x128xf32>
    %179 = tpu.concatenate %126, %152, %178 in 0 : vector<8x128xf32>, vector<8x128xf32>, vector<8x128xf32> -> vector<24x128xf32>
    %c2_i32 = arith.constant 2 : i32
    %180 = arith.index_cast %c2_i32 : i32 to index
    %c0_30 = arith.constant 0 : index
    %c0_31 = arith.constant 0 : index
    %181 = vector.load %arg1[%180, %c0_30, %c0_31] : memref<4x8x384xf32, #tpu.memory_space<vmem>>, vector<1x8x384xf32>
    %182 = vector.shape_cast %181 : vector<1x8x384xf32> to vector<8x384xf32>
    %cst_32 = arith.constant dense<0.000000e+00> : vector<24x384xf32>
    %183 = tpu.matmul %179, %3, %cst_32 {dimension_numbers = #tpu.dot_dimension_numbers<[1], [0], [0], [1], [0, 0, 1, 1], [], []>} : vector<24x128xf32>, vector<128x384xf32>, vector<24x384xf32> -> vector<24x384xf32>
    %184 = vector.extract_strided_slice %182 {offsets = [0, 0], sizes = [8, 128], strides = [1, 1]} : vector<8x384xf32> to vector<8x128xf32>
    %185 = vector.extract_strided_slice %182 {offsets = [0, 128], sizes = [8, 128], strides = [1, 1]} : vector<8x384xf32> to vector<8x128xf32>
    %186 = vector.extract_strided_slice %182 {offsets = [0, 256], sizes = [8, 128], strides = [1, 1]} : vector<8x384xf32> to vector<8x128xf32>
    %187 = vector.extract_strided_slice %183 {offsets = [0, 0], sizes = [8, 384], strides = [1, 1]} : vector<24x384xf32> to vector<8x384xf32>
    %188 = vector.extract_strided_slice %179 {offsets = [0, 0], sizes = [8, 128], strides = [1, 1]} : vector<24x128xf32> to vector<8x128xf32>
    %189 = vector.extract_strided_slice %187 {offsets = [0, 0], sizes = [8, 128], strides = [1, 1]} : vector<8x384xf32> to vector<8x128xf32>
    %190 = arith.addf %184, %189 : vector<8x128xf32>
    %191 = arith.negf %190 : vector<8x128xf32>
    %192 = math.exp %191 : vector<8x128xf32>
    %cst_33 = arith.constant 1.000000e+00 : f32
    %193 = vector.broadcast %cst_33 : f32 to vector<8x128xf32>
    %194 = arith.addf %193, %192 : vector<8x128xf32>
    %195 = arith.divf %193, %194 : vector<8x128xf32>
    %196 = vector.extract_strided_slice %187 {offsets = [0, 128], sizes = [8, 128], strides = [1, 1]} : vector<8x384xf32> to vector<8x128xf32>
    %197 = arith.addf %185, %196 : vector<8x128xf32>
    %198 = arith.negf %197 : vector<8x128xf32>
    %199 = math.exp %198 : vector<8x128xf32>
    %cst_34 = arith.constant 1.000000e+00 : f32
    %200 = vector.broadcast %cst_34 : f32 to vector<8x128xf32>
    %201 = arith.addf %200, %199 : vector<8x128xf32>
    %202 = arith.divf %200, %201 : vector<8x128xf32>
    %203 = vector.extract_strided_slice %187 {offsets = [0, 256], sizes = [8, 128], strides = [1, 1]} : vector<8x384xf32> to vector<8x128xf32>
    %204 = arith.addf %203, %6 : vector<8x128xf32>
    %205 = arith.mulf %195, %204 : vector<8x128xf32>
    %206 = arith.addf %186, %205 : vector<8x128xf32>
    %207 = math.tanh %206 : vector<8x128xf32>
    %cst_35 = arith.constant 1.000000e+00 : f32
    %208 = vector.broadcast %cst_35 : f32 to vector<8x128xf32>
    %209 = arith.subf %208, %202 : vector<8x128xf32>
    %210 = arith.mulf %209, %207 : vector<8x128xf32>
    %211 = arith.mulf %202, %188 : vector<8x128xf32>
    %212 = arith.addf %210, %211 : vector<8x128xf32>
    %213 = vector.extract_strided_slice %183 {offsets = [8, 0], sizes = [8, 384], strides = [1, 1]} : vector<24x384xf32> to vector<8x384xf32>
    %214 = vector.extract_strided_slice %179 {offsets = [8, 0], sizes = [8, 128], strides = [1, 1]} : vector<24x128xf32> to vector<8x128xf32>
    %215 = vector.extract_strided_slice %213 {offsets = [0, 0], sizes = [8, 128], strides = [1, 1]} : vector<8x384xf32> to vector<8x128xf32>
    %216 = arith.addf %184, %215 : vector<8x128xf32>
    %217 = arith.negf %216 : vector<8x128xf32>
    %218 = math.exp %217 : vector<8x128xf32>
    %cst_36 = arith.constant 1.000000e+00 : f32
    %219 = vector.broadcast %cst_36 : f32 to vector<8x128xf32>
    %220 = arith.addf %219, %218 : vector<8x128xf32>
    %221 = arith.divf %219, %220 : vector<8x128xf32>
    %222 = vector.extract_strided_slice %213 {offsets = [0, 128], sizes = [8, 128], strides = [1, 1]} : vector<8x384xf32> to vector<8x128xf32>
    %223 = arith.addf %185, %222 : vector<8x128xf32>
    %224 = arith.negf %223 : vector<8x128xf32>
    %225 = math.exp %224 : vector<8x128xf32>
    %cst_37 = arith.constant 1.000000e+00 : f32
    %226 = vector.broadcast %cst_37 : f32 to vector<8x128xf32>
    %227 = arith.addf %226, %225 : vector<8x128xf32>
    %228 = arith.divf %226, %227 : vector<8x128xf32>
    %229 = vector.extract_strided_slice %213 {offsets = [0, 256], sizes = [8, 128], strides = [1, 1]} : vector<8x384xf32> to vector<8x128xf32>
    %230 = arith.addf %229, %6 : vector<8x128xf32>
    %231 = arith.mulf %221, %230 : vector<8x128xf32>
    %232 = arith.addf %186, %231 : vector<8x128xf32>
    %233 = math.tanh %232 : vector<8x128xf32>
    %cst_38 = arith.constant 1.000000e+00 : f32
    %234 = vector.broadcast %cst_38 : f32 to vector<8x128xf32>
    %235 = arith.subf %234, %228 : vector<8x128xf32>
    %236 = arith.mulf %235, %233 : vector<8x128xf32>
    %237 = arith.mulf %228, %214 : vector<8x128xf32>
    %238 = arith.addf %236, %237 : vector<8x128xf32>
    %239 = vector.extract_strided_slice %183 {offsets = [16, 0], sizes = [8, 384], strides = [1, 1]} : vector<24x384xf32> to vector<8x384xf32>
    %240 = vector.extract_strided_slice %179 {offsets = [16, 0], sizes = [8, 128], strides = [1, 1]} : vector<24x128xf32> to vector<8x128xf32>
    %241 = vector.extract_strided_slice %239 {offsets = [0, 0], sizes = [8, 128], strides = [1, 1]} : vector<8x384xf32> to vector<8x128xf32>
    %242 = arith.addf %184, %241 : vector<8x128xf32>
    %243 = arith.negf %242 : vector<8x128xf32>
    %244 = math.exp %243 : vector<8x128xf32>
    %cst_39 = arith.constant 1.000000e+00 : f32
    %245 = vector.broadcast %cst_39 : f32 to vector<8x128xf32>
    %246 = arith.addf %245, %244 : vector<8x128xf32>
    %247 = arith.divf %245, %246 : vector<8x128xf32>
    %248 = vector.extract_strided_slice %239 {offsets = [0, 128], sizes = [8, 128], strides = [1, 1]} : vector<8x384xf32> to vector<8x128xf32>
    %249 = arith.addf %185, %248 : vector<8x128xf32>
    %250 = arith.negf %249 : vector<8x128xf32>
    %251 = math.exp %250 : vector<8x128xf32>
    %cst_40 = arith.constant 1.000000e+00 : f32
    %252 = vector.broadcast %cst_40 : f32 to vector<8x128xf32>
    %253 = arith.addf %252, %251 : vector<8x128xf32>
    %254 = arith.divf %252, %253 : vector<8x128xf32>
    %255 = vector.extract_strided_slice %239 {offsets = [0, 256], sizes = [8, 128], strides = [1, 1]} : vector<8x384xf32> to vector<8x128xf32>
    %256 = arith.addf %255, %6 : vector<8x128xf32>
    %257 = arith.mulf %247, %256 : vector<8x128xf32>
    %258 = arith.addf %186, %257 : vector<8x128xf32>
    %259 = math.tanh %258 : vector<8x128xf32>
    %cst_41 = arith.constant 1.000000e+00 : f32
    %260 = vector.broadcast %cst_41 : f32 to vector<8x128xf32>
    %261 = arith.subf %260, %254 : vector<8x128xf32>
    %262 = arith.mulf %261, %259 : vector<8x128xf32>
    %263 = arith.mulf %254, %240 : vector<8x128xf32>
    %264 = arith.addf %262, %263 : vector<8x128xf32>
    %265 = tpu.concatenate %212, %238, %264 in 0 : vector<8x128xf32>, vector<8x128xf32>, vector<8x128xf32> -> vector<24x128xf32>
    %c3_i32 = arith.constant 3 : i32
    %266 = arith.index_cast %c3_i32 : i32 to index
    %c0_42 = arith.constant 0 : index
    %c0_43 = arith.constant 0 : index
    %267 = vector.load %arg1[%266, %c0_42, %c0_43] : memref<4x8x384xf32, #tpu.memory_space<vmem>>, vector<1x8x384xf32>
    %268 = vector.shape_cast %267 : vector<1x8x384xf32> to vector<8x384xf32>
    %cst_44 = arith.constant dense<0.000000e+00> : vector<24x384xf32>
    %269 = tpu.matmul %265, %3, %cst_44 {dimension_numbers = #tpu.dot_dimension_numbers<[1], [0], [0], [1], [0, 0, 1, 1], [], []>} : vector<24x128xf32>, vector<128x384xf32>, vector<24x384xf32> -> vector<24x384xf32>
    %270 = vector.extract_strided_slice %268 {offsets = [0, 0], sizes = [8, 128], strides = [1, 1]} : vector<8x384xf32> to vector<8x128xf32>
    %271 = vector.extract_strided_slice %268 {offsets = [0, 128], sizes = [8, 128], strides = [1, 1]} : vector<8x384xf32> to vector<8x128xf32>
    %272 = vector.extract_strided_slice %268 {offsets = [0, 256], sizes = [8, 128], strides = [1, 1]} : vector<8x384xf32> to vector<8x128xf32>
    %273 = vector.extract_strided_slice %269 {offsets = [0, 0], sizes = [8, 384], strides = [1, 1]} : vector<24x384xf32> to vector<8x384xf32>
    %274 = vector.extract_strided_slice %265 {offsets = [0, 0], sizes = [8, 128], strides = [1, 1]} : vector<24x128xf32> to vector<8x128xf32>
    %275 = vector.extract_strided_slice %273 {offsets = [0, 0], sizes = [8, 128], strides = [1, 1]} : vector<8x384xf32> to vector<8x128xf32>
    %276 = arith.addf %270, %275 : vector<8x128xf32>
    %277 = arith.negf %276 : vector<8x128xf32>
    %278 = math.exp %277 : vector<8x128xf32>
    %cst_45 = arith.constant 1.000000e+00 : f32
    %279 = vector.broadcast %cst_45 : f32 to vector<8x128xf32>
    %280 = arith.addf %279, %278 : vector<8x128xf32>
    %281 = arith.divf %279, %280 : vector<8x128xf32>
    %282 = vector.extract_strided_slice %273 {offsets = [0, 128], sizes = [8, 128], strides = [1, 1]} : vector<8x384xf32> to vector<8x128xf32>
    %283 = arith.addf %271, %282 : vector<8x128xf32>
    %284 = arith.negf %283 : vector<8x128xf32>
    %285 = math.exp %284 : vector<8x128xf32>
    %cst_46 = arith.constant 1.000000e+00 : f32
    %286 = vector.broadcast %cst_46 : f32 to vector<8x128xf32>
    %287 = arith.addf %286, %285 : vector<8x128xf32>
    %288 = arith.divf %286, %287 : vector<8x128xf32>
    %289 = vector.extract_strided_slice %273 {offsets = [0, 256], sizes = [8, 128], strides = [1, 1]} : vector<8x384xf32> to vector<8x128xf32>
    %290 = arith.addf %289, %6 : vector<8x128xf32>
    %291 = arith.mulf %281, %290 : vector<8x128xf32>
    %292 = arith.addf %272, %291 : vector<8x128xf32>
    %293 = math.tanh %292 : vector<8x128xf32>
    %cst_47 = arith.constant 1.000000e+00 : f32
    %294 = vector.broadcast %cst_47 : f32 to vector<8x128xf32>
    %295 = arith.subf %294, %288 : vector<8x128xf32>
    %296 = arith.mulf %295, %293 : vector<8x128xf32>
    %297 = arith.mulf %288, %274 : vector<8x128xf32>
    %298 = arith.addf %296, %297 : vector<8x128xf32>
    %299 = vector.extract_strided_slice %269 {offsets = [8, 0], sizes = [8, 384], strides = [1, 1]} : vector<24x384xf32> to vector<8x384xf32>
    %300 = vector.extract_strided_slice %265 {offsets = [8, 0], sizes = [8, 128], strides = [1, 1]} : vector<24x128xf32> to vector<8x128xf32>
    %301 = vector.extract_strided_slice %299 {offsets = [0, 0], sizes = [8, 128], strides = [1, 1]} : vector<8x384xf32> to vector<8x128xf32>
    %302 = arith.addf %270, %301 : vector<8x128xf32>
    %303 = arith.negf %302 : vector<8x128xf32>
    %304 = math.exp %303 : vector<8x128xf32>
    %cst_48 = arith.constant 1.000000e+00 : f32
    %305 = vector.broadcast %cst_48 : f32 to vector<8x128xf32>
    %306 = arith.addf %305, %304 : vector<8x128xf32>
    %307 = arith.divf %305, %306 : vector<8x128xf32>
    %308 = vector.extract_strided_slice %299 {offsets = [0, 128], sizes = [8, 128], strides = [1, 1]} : vector<8x384xf32> to vector<8x128xf32>
    %309 = arith.addf %271, %308 : vector<8x128xf32>
    %310 = arith.negf %309 : vector<8x128xf32>
    %311 = math.exp %310 : vector<8x128xf32>
    %cst_49 = arith.constant 1.000000e+00 : f32
    %312 = vector.broadcast %cst_49 : f32 to vector<8x128xf32>
    %313 = arith.addf %312, %311 : vector<8x128xf32>
    %314 = arith.divf %312, %313 : vector<8x128xf32>
    %315 = vector.extract_strided_slice %299 {offsets = [0, 256], sizes = [8, 128], strides = [1, 1]} : vector<8x384xf32> to vector<8x128xf32>
    %316 = arith.addf %315, %6 : vector<8x128xf32>
    %317 = arith.mulf %307, %316 : vector<8x128xf32>
    %318 = arith.addf %272, %317 : vector<8x128xf32>
    %319 = math.tanh %318 : vector<8x128xf32>
    %cst_50 = arith.constant 1.000000e+00 : f32
    %320 = vector.broadcast %cst_50 : f32 to vector<8x128xf32>
    %321 = arith.subf %320, %314 : vector<8x128xf32>
    %322 = arith.mulf %321, %319 : vector<8x128xf32>
    %323 = arith.mulf %314, %300 : vector<8x128xf32>
    %324 = arith.addf %322, %323 : vector<8x128xf32>
    %325 = vector.extract_strided_slice %269 {offsets = [16, 0], sizes = [8, 384], strides = [1, 1]} : vector<24x384xf32> to vector<8x384xf32>
    %326 = vector.extract_strided_slice %265 {offsets = [16, 0], sizes = [8, 128], strides = [1, 1]} : vector<24x128xf32> to vector<8x128xf32>
    %327 = vector.extract_strided_slice %325 {offsets = [0, 0], sizes = [8, 128], strides = [1, 1]} : vector<8x384xf32> to vector<8x128xf32>
    %328 = arith.addf %270, %327 : vector<8x128xf32>
    %329 = arith.negf %328 : vector<8x128xf32>
    %330 = math.exp %329 : vector<8x128xf32>
    %cst_51 = arith.constant 1.000000e+00 : f32
    %331 = vector.broadcast %cst_51 : f32 to vector<8x128xf32>
    %332 = arith.addf %331, %330 : vector<8x128xf32>
    %333 = arith.divf %331, %332 : vector<8x128xf32>
    %334 = vector.extract_strided_slice %325 {offsets = [0, 128], sizes = [8, 128], strides = [1, 1]} : vector<8x384xf32> to vector<8x128xf32>
    %335 = arith.addf %271, %334 : vector<8x128xf32>
    %336 = arith.negf %335 : vector<8x128xf32>
    %337 = math.exp %336 : vector<8x128xf32>
    %cst_52 = arith.constant 1.000000e+00 : f32
    %338 = vector.broadcast %cst_52 : f32 to vector<8x128xf32>
    %339 = arith.addf %338, %337 : vector<8x128xf32>
    %340 = arith.divf %338, %339 : vector<8x128xf32>
    %341 = vector.extract_strided_slice %325 {offsets = [0, 256], sizes = [8, 128], strides = [1, 1]} : vector<8x384xf32> to vector<8x128xf32>
    %342 = arith.addf %341, %6 : vector<8x128xf32>
    %343 = arith.mulf %333, %342 : vector<8x128xf32>
    %344 = arith.addf %272, %343 : vector<8x128xf32>
    %345 = math.tanh %344 : vector<8x128xf32>
    %cst_53 = arith.constant 1.000000e+00 : f32
    %346 = vector.broadcast %cst_53 : f32 to vector<8x128xf32>
    %347 = arith.subf %346, %340 : vector<8x128xf32>
    %348 = arith.mulf %347, %345 : vector<8x128xf32>
    %349 = arith.mulf %340, %326 : vector<8x128xf32>
    %350 = arith.addf %348, %349 : vector<8x128xf32>
    %351 = tpu.concatenate %298, %324, %350 in 0 : vector<8x128xf32>, vector<8x128xf32>, vector<8x128xf32> -> vector<24x128xf32>
    %c4_i32 = arith.constant 4 : i32
    %c0_54 = arith.constant 0 : index
    %c0_55 = arith.constant 0 : index
    %352 = vector.load %arg8[%c0_54, %c0_55] : memref<24x128xf32, #tpu.memory_space<vmem>>, vector<24x128xf32>
    tpu.vector_store %arg8[%c0_54, %c0_55], %351 {strides = array<i32>} : memref<24x128xf32, #tpu.memory_space<vmem>>, vector<24x128xf32>,
    %c1_i32_56 = arith.constant 1 : i32
    %353 = arith.cmpi eq, %arg0, %c1_i32_56 : i32
    %354 = arith.extui %353 : i1 to i32
    %c0_i32_57 = arith.constant 0 : i32
    %355 = arith.cmpi ne, %354, %c0_i32_57 : i32
    scf.if %355 {
      %c0_58 = arith.constant 0 : index
      %c0_59 = arith.constant 0 : index
      %356 = vector.load %arg8[%c0_58, %c0_59] : memref<24x128xf32, #tpu.memory_space<vmem>>, vector<24x128xf32>
      %357 = tpu.iota {dimensions = array<i32: 0>} : vector<8x128xi32>
      %c4_i32_60 = arith.constant 4 : i32
      %358 = vector.broadcast %c4_i32_60 : i32 to vector<8x128xi32>
      %359 = arith.cmpi slt, %357, %358 : vector<8x128xi32>
      %cst_61 = arith.constant 0.000000e+00 : f32
      %360 = vector.broadcast %cst_61 : f32 to vector<8x128xf32>
      %361 = vector.extract_strided_slice %356 {offsets = [0, 0], sizes = [8, 128], strides = [1, 1]} : vector<24x128xf32> to vector<8x128xf32>
      %cst_62 = arith.constant 0.000000e+00 : f32
      %362 = vector.broadcast %cst_62 : f32 to vector<8x128xf32>
      %363 = arith.select %359, %361, %362 : vector<8x128xi1>, vector<8x128xf32>
      %cst_63 = arith.constant dense<0.000000e+00> : vector<128xf32>
      %364 = vector.multi_reduction <add>, %363, %cst_63 [0] : vector<8x128xf32> to vector<128xf32>
      %365 = vector.shape_cast %364 : vector<128xf32> to vector<1x128xf32>
      %cst_64 = arith.constant 2.500000e-01 : f32
      %366 = vector.broadcast %cst_64 : f32 to vector<1x128xf32>
      %367 = arith.mulf %365, %366 : vector<1x128xf32>
      %368 = arith.addf %360, %361 : vector<8x128xf32>
      %369 = vector.extract_strided_slice %356 {offsets = [8, 0], sizes = [8, 128], strides = [1, 1]} : vector<24x128xf32> to vector<8x128xf32>
      %cst_65 = arith.constant 0.000000e+00 : f32
      %370 = vector.broadcast %cst_65 : f32 to vector<8x128xf32>
      %371 = arith.select %359, %369, %370 : vector<8x128xi1>, vector<8x128xf32>
      %cst_66 = arith.constant dense<0.000000e+00> : vector<128xf32>
      %372 = vector.multi_reduction <add>, %371, %cst_66 [0] : vector<8x128xf32> to vector<128xf32>
      %373 = vector.shape_cast %372 : vector<128xf32> to vector<1x128xf32>
      %cst_67 = arith.constant 2.500000e-01 : f32
      %374 = vector.broadcast %cst_67 : f32 to vector<1x128xf32>
      %375 = arith.mulf %373, %374 : vector<1x128xf32>
      %376 = arith.addf %368, %369 : vector<8x128xf32>
      %377 = vector.extract_strided_slice %356 {offsets = [16, 0], sizes = [8, 128], strides = [1, 1]} : vector<24x128xf32> to vector<8x128xf32>
      %cst_68 = arith.constant 0.000000e+00 : f32
      %378 = vector.broadcast %cst_68 : f32 to vector<8x128xf32>
      %379 = arith.select %359, %377, %378 : vector<8x128xi1>, vector<8x128xf32>
      %cst_69 = arith.constant dense<0.000000e+00> : vector<128xf32>
      %380 = vector.multi_reduction <add>, %379, %cst_69 [0] : vector<8x128xf32> to vector<128xf32>
      %381 = vector.shape_cast %380 : vector<128xf32> to vector<1x128xf32>
      %cst_70 = arith.constant 2.500000e-01 : f32
      %382 = vector.broadcast %cst_70 : f32 to vector<1x128xf32>
      %383 = arith.mulf %381, %382 : vector<1x128xf32>
      %384 = arith.addf %376, %377 : vector<8x128xf32>
      %385 = tpu.concatenate %367, %375, %383 in 0 : vector<1x128xf32>, vector<1x128xf32>, vector<1x128xf32> -> vector<3x128xf32>
      %c0_71 = arith.constant 0 : index
      %c0_72 = arith.constant 0 : index
      %386 = vector.load %arg7[%c0_71, %c0_72] : memref<3x128xf32, #tpu.memory_space<vmem>>, vector<3x128xf32>
      tpu.vector_store %arg7[%c0_71, %c0_72], %385 {strides = array<i32>} : memref<3x128xf32, #tpu.memory_space<vmem>>, vector<3x128xf32>,
      %c0_73 = arith.constant 0 : index
      %c0_74 = arith.constant 0 : index
      %387 = vector.load %arg4[%c0_73, %c0_74] : memref<128x128xf32, #tpu.memory_space<vmem>>, vector<128x128xf32>
      %cst_75 = arith.constant dense<0.000000e+00> : vector<8x128xf32>
      %388 = tpu.matmul %384, %387, %cst_75 {dimension_numbers = #tpu.dot_dimension_numbers<[1], [0], [0], [1], [0, 0, 1, 1], [], []>} : vector<8x128xf32>, vector<128x128xf32>, vector<8x128xf32> -> vector<8x128xf32>
      %c0_76 = arith.constant 0 : index
      %c0_77 = arith.constant 0 : index
      %389 = vector.load %arg5[%c0_76, %c0_77] : memref<1x128xf32, #tpu.memory_space<vmem>>, vector<1x128xf32>
      %390 = vector.broadcast %389 : vector<1x128xf32> to vector<8x128xf32>
      %391 = arith.addf %388, %390 : vector<8x128xf32>
      %cst_78 = arith.constant 0.000000e+00 : f32
      %392 = vector.broadcast %cst_78 : f32 to vector<8x128xf32>
      %393 = arith.cmpf ogt, %391, %392 : vector<8x128xf32>
      %cst_79 = arith.constant 0.000000e+00 : f32
      %394 = vector.broadcast %cst_79 : f32 to vector<8x128xf32>
      %395 = arith.minimumf %391, %394 : vector<8x128xf32>
      %396 = math.exp %395 : vector<8x128xf32>
      %cst_80 = arith.constant 1.000000e+00 : f32
      %397 = vector.broadcast %cst_80 : f32 to vector<8x128xf32>
      %398 = arith.subf %396, %397 : vector<8x128xf32>
      %399 = arith.select %393, %391, %398 : vector<8x128xi1>, vector<8x128xf32>
      %c0_81 = arith.constant 0 : index
      %c0_82 = arith.constant 0 : index
      %400 = vector.load %arg6[%c0_81, %c0_82] : memref<8x128xf32, #tpu.memory_space<vmem>>, vector<8x128xf32>
      tpu.vector_store %arg6[%c0_81, %c0_82], %399 {strides = array<i32>} : memref<8x128xf32, #tpu.memory_space<vmem>>, vector<8x128xf32>,
    } else {
    }
    return
  }
  func.func @transform_0(%arg0: i32) -> (i32, i32, i32) {
    %c0_i32 = arith.constant 0 : i32
    %c0_i32_0 = arith.constant 0 : i32
    %c0_i32_1 = arith.constant 0 : i32
    return %arg0, %c0_i32, %c0_i32_0 : i32, i32, i32
  }
  func.func @transform_1(%arg0: i32) -> (i32, i32) {
    %c0_i32 = arith.constant 0 : i32
    %c0_i32_0 = arith.constant 0 : i32
    %c0_i32_1 = arith.constant 0 : i32
    return %c0_i32, %c0_i32_0 : i32, i32
  }
  func.func @transform_2(%arg0: i32) -> (i32, i32) {
    %c0_i32 = arith.constant 0 : i32
    %c0_i32_0 = arith.constant 0 : i32
    %c0_i32_1 = arith.constant 0 : i32
    return %c0_i32, %c0_i32_0 : i32, i32
  }
  func.func @transform_3(%arg0: i32) -> (i32, i32) {
    %c0_i32 = arith.constant 0 : i32
    %c0_i32_0 = arith.constant 0 : i32
    %c0_i32_1 = arith.constant 0 : i32
    return %c0_i32, %c0_i32_0 : i32, i32
  }
  func.func @transform_4(%arg0: i32) -> (i32, i32) {
    %c0_i32 = arith.constant 0 : i32
    %c0_i32_0 = arith.constant 0 : i32
    %c0_i32_1 = arith.constant 0 : i32
    return %c0_i32, %c0_i32_0 : i32, i32
  }
  func.func @transform_5(%arg0: i32) -> (i32, i32) {
    %c0_i32 = arith.constant 0 : i32
    %c0_i32_0 = arith.constant 0 : i32
    %c0_i32_1 = arith.constant 0 : i32
    return %c0_i32, %c0_i32_0 : i32, i32
  }
  func.func @transform_6(%arg0: i32) -> (i32, i32) {
    %c0_i32 = arith.constant 0 : i32
    %c0_i32_0 = arith.constant 0 : i32
    %c0_i32_1 = arith.constant 0 : i32
    return %c0_i32, %c0_i32_0 : i32, i32
  }
}

</mosaic_0001>

<llo_original>
// kernel: cru_forward.1
$region0: #{cru_forward.1}
  #allocation0 [shape = 'u32[]', space=smem, size = 0x4, offset = 0x4, fixed_abs, tag = 'smem constant byte address 0x4 - core index']
  #allocation1 [shape = 'u32[72,128]{1,0:T(1,128)}', space=vmem, size = 0x9000, scoped, tag = 'internal scratch']
  #allocation2 [shape = 'f32[24,128]{1,0:T(8,128)}', space=vmem, size = 0x3000, scoped, tag = 'scratch operand']
  %s0 = inlined_call_operand.vmem [shape: f32[8,8,384], index: 0, kind: input, shape index: {}]
  %s1 = inlined_call_operand.vmem [shape: f32[128,384], index: 1, kind: input, shape index: {}]
  %s2 = inlined_call_operand.vmem [shape: f32[1,128], index: 2, kind: input, shape index: {}]
  %s3 = inlined_call_operand.vmem [shape: f32[128,128], index: 3, kind: input, shape index: {}]
  %s4 = inlined_call_operand.vmem [shape: f32[1,128], index: 4, kind: input, shape index: {}]
  %s5 = inlined_call_operand.vmem [shape: f32[8,128], index: 5, kind: output, shape index: {0}]
  %s6 = inlined_call_operand.hbm [shape: f32[3,128], index: 6, kind: output, shape index: {1}]
  %7 = xla_tuple %s5, %s6
  %s8 = sld [smem:[#allocation0]]
  $region69: #{cru_forward.1} parent=0
    _
  %s10 = ssub.s32 1, %s8
  %s11 = scalar_select 0, %s10, %s8
  $region1: #{cru_forward.1} parent=0
    #allocation3 [shape = 'u8[2048]{0}', space=vmem, size = 0x800, scoped, tag = 'output window, operand 1, single buffered']
    #allocation4 [shape = 's32[2]{0}', space=sflag, size = 0x8, scoped, tag = 'scoped memory for cru_forward.1']
    %12 = vsyncpa [#allocation4], 0
    loop: start=0, step=1, limit=4
    $region2: #{cru_forward.1} parent=1 // loop_pre_header
      _
    $region3: #{cru_forward.1} parent=1 // loop_header
      %s14 = sphi 0, %s18
      %p15 = scmp.ge.s32.totalorder %s14, 4
      %s24 = sphi 0, %s26
      %s27 = sphi 0, %s24
      %s28 = sphi 0, %s27
      %s44 = sphi 0, %s28
      %s48 = sphi 0, %s48
      %s50 = sphi 0, %s48
      %s51 = sphi 0, %s50
      %s65 = sphi 0, %s51
      %s69 = sphi 0, %s69
      %s71 = sphi 0, %s69
      %s72 = sphi 0, %s71
      %s86 = sphi 0, %s72
      %s90 = sphi 0, %s90
      %s92 = sphi 0, %s90
      %s93 = sphi 0, %s92
      %s107 = sphi 0, %s93
      %s111 = sphi 0, %s111
      %s113 = sphi 0, %s111
      %s114 = sphi 0, %s113
      %s128 = sphi 0, %s114
      %s132 = sphi 0, %s132
      %s134 = sphi 0, %s132
      %s135 = sphi 0, %s134
      %s149 = sphi 0, %s135
      %s153 = sphi 0, %s153
      %s155 = sphi 0, %s153
      %s156 = sphi 0, %s155
      %s170 = sphi 0, %s156
    $region4: #{cru_forward.1} parent=1 // loop_header_branch
      %17 = sbr.rel (%p15) target = $region8
    $region5: #{cru_forward.1} parent=1 // loop_body
      %s19 = ssub.s32 %s14, 1
      %s20 = ssub.s32 %s14, 2
      %s21 = sadd.s32 %s14, 1
      %s22 = ssub.s32 %s14, %s21
      %p23 = scmp.eq.s32.totalorder %s22, 0
      %s25 = sadd.s32 %s24, 1
      %s26 = scalar_select %p23, %s24, %s25
      %p29 = pneg %p23
      %p30 = scmp.eq.s32.totalorder %s14, 1
      %p31 = por %p29, %p30
      %p32 = scmp.ne.s32.totalorder %s24, %s27
      %p33 = scmp.eq.s32.totalorder %s14, 0
      %p34 = por %p32, %p33
      %p35 = scmp.ne.s32.totalorder %s24, %s27
      %p36 = scmp.eq.s32.totalorder %s19, 1
      %p37 = por %p35, %p36
      %p38 = scmp.ne.s32.totalorder %s27, %s28
      %p39 = scmp.eq.s32.totalorder %s19, 0
      %p40 = por %p38, %p39
      %p41 = scmp.ne.s32.totalorder %s27, %s28
      %p42 = scmp.eq.s32.totalorder %s20, 1
      %p43 = por %p41, %p42
      %p45 = scmp.ne.s32.totalorder %s28, %s44
      %p46 = scmp.eq.s32.totalorder %s20, 0
      %p47 = por %p45, %p46
      %s49 = sadd.s32 %s48, 1
      %p52 = scmp.eq.s32.totalorder %s14, 1
      %p53 = scmp.ne.s32.totalorder %s48, %s50
      %p54 = scmp.eq.s32.totalorder %s14, 0
      %p55 = por %p53, %p54
      %p56 = scmp.ne.s32.totalorder %s48, %s50
      %p57 = scmp.eq.s32.totalorder %s19, 1
      %p58 = por %p56, %p57
      %p59 = scmp.ne.s32.totalorder %s50, %s51
      %p60 = scmp.eq.s32.totalorder %s19, 0
      %p61 = por %p59, %p60
      %p62 = scmp.ne.s32.totalorder %s50, %s51
      %p63 = scmp.eq.s32.totalorder %s20, 1
      %p64 = por %p62, %p63
      %p66 = scmp.ne.s32.totalorder %s51, %s65
      %p67 = scmp.eq.s32.totalorder %s20, 0
      %p68 = por %p66, %p67
      %s70 = sadd.s32 %s69, 1
      %p73 = scmp.eq.s32.totalorder %s14, 1
      %p74 = scmp.ne.s32.totalorder %s69, %s71
      %p75 = scmp.eq.s32.totalorder %s14, 0
      %p76 = por %p74, %p75
      %p77 = scmp.ne.s32.totalorder %s69, %s71
      %p78 = scmp.eq.s32.totalorder %s19, 1
      %p79 = por %p77, %p78
      %p80 = scmp.ne.s32.totalorder %s71, %s72
      %p81 = scmp.eq.s32.totalorder %s19, 0
      %p82 = por %p80, %p81
      %p83 = scmp.ne.s32.totalorder %s71, %s72
      %p84 = scmp.eq.s32.totalorder %s20, 1
      %p85 = por %p83, %p84
      %p87 = scmp.ne.s32.totalorder %s72, %s86
      %p88 = scmp.eq.s32.totalorder %s20, 0
      %p89 = por %p87, %p88
      %s91 = sadd.s32 %s90, 1
      %p94 = scmp.eq.s32.totalorder %s14, 1
      %p95 = scmp.ne.s32.totalorder %s90, %s92
      %p96 = scmp.eq.s32.totalorder %s14, 0
      %p97 = por %p95, %p96
      %p98 = scmp.ne.s32.totalorder %s90, %s92
      %p99 = scmp.eq.s32.totalorder %s19, 1
      %p100 = por %p98, %p99
      %p101 = scmp.ne.s32.totalorder %s92, %s93
      %p102 = scmp.eq.s32.totalorder %s19, 0
      %p103 = por %p101, %p102
      %p104 = scmp.ne.s32.totalorder %s92, %s93
      %p105 = scmp.eq.s32.totalorder %s20, 1
      %p106 = por %p104, %p105
      %p108 = scmp.ne.s32.totalorder %s93, %s107
      %p109 = scmp.eq.s32.totalorder %s20, 0
      %p110 = por %p108, %p109
      %s112 = sadd.s32 %s111, 1
      %p115 = scmp.eq.s32.totalorder %s14, 1
      %p116 = scmp.ne.s32.totalorder %s111, %s113
      %p117 = scmp.eq.s32.totalorder %s14, 0
      %p118 = por %p116, %p117
      %p119 = scmp.ne.s32.totalorder %s111, %s113
      %p120 = scmp.eq.s32.totalorder %s19, 1
      %p121 = por %p119, %p120
      %p122 = scmp.ne.s32.totalorder %s113, %s114
      %p123 = scmp.eq.s32.totalorder %s19, 0
      %p124 = por %p122, %p123
      %p125 = scmp.ne.s32.totalorder %s113, %s114
      %p126 = scmp.eq.s32.totalorder %s20, 1
      %p127 = por %p125, %p126
      %p129 = scmp.ne.s32.totalorder %s114, %s128
      %p130 = scmp.eq.s32.totalorder %s20, 0
      %p131 = por %p129, %p130
      %s133 = sadd.s32 %s132, 1
      %p136 = scmp.eq.s32.totalorder %s14, 1
      %p137 = scmp.ne.s32.totalorder %s132, %s134
      %p138 = scmp.eq.s32.totalorder %s14, 0
      %p139 = por %p137, %p138
      %p140 = scmp.ne.s32.totalorder %s132, %s134
      %p141 = scmp.eq.s32.totalorder %s19, 1
      %p142 = por %p140, %p141
      %p143 = scmp.ne.s32.totalorder %s134, %s135
      %p144 = scmp.eq.s32.totalorder %s19, 0
      %p145 = por %p143, %p144
      %p146 = scmp.ne.s32.totalorder %s134, %s135
      %p147 = scmp.eq.s32.totalorder %s20, 1
      %p148 = por %p146, %p147
      %p150 = scmp.ne.s32.totalorder %s135, %s149
      %p151 = scmp.eq.s32.totalorder %s20, 0
      %p152 = por %p150, %p151
      %s154 = sadd.s32 %s153, 1
      %p157 = scmp.eq.s32.totalorder %s14, 1
      %p158 = scmp.ne.s32.totalorder %s153, %s155
      %p159 = scmp.eq.s32.totalorder %s14, 0
      %p160 = por %p158, %p159
      %p161 = scmp.ne.s32.totalorder %s153, %s155
      %p162 = scmp.eq.s32.totalorder %s19, 1
      %p163 = por %p161, %p162
      %p164 = scmp.ne.s32.totalorder %s155, %s156
      %p165 = scmp.eq.s32.totalorder %s19, 0
      %p166 = por %p164, %p165
      %p167 = scmp.ne.s32.totalorder %s155, %s156
      %p168 = scmp.eq.s32.totalorder %s20, 1
      %p169 = por %p167, %p168
      %p171 = scmp.ne.s32.totalorder %s156, %s170
      %p172 = scmp.eq.s32.totalorder %s20, 0
      %p173 = por %p171, %p172
      %p174 = scmp.le.s32.totalorder 1, %s14
      %p175 = scmp.lt.s32.totalorder %s14, 3
      %p176 = pnand %p174, %p175
      %p177 = pneg %p176
      // Predicated region
      $region9: #{cru_forward.1} parent=5 // pred_check
        _
      $region10: #{cru_forward.1} parent=5 // pred_check_branch
        %179 = sbr.rel (%p176) target = $region12
      $region11: #{cru_forward.1} parent=5 // pred_region
        %s180 = ssub.s32 %s14, 1
        // Predicated region
        $region13: #{cru_forward.1} parent=11 // pred_check
          %p181 = pneg %p61
        $region14: #{cru_forward.1} parent=11 // pred_check_branch
          %183 = sbr.rel (%p181) target = $region16
        $region15: #{cru_forward.1} parent=11 // pred_region
          _
        $region16: #{cru_forward.1} parent=11 // pred_fallthru
          _
        // Predicated region
        $region17: #{cru_forward.1} parent=11 // pred_check
          %p184 = pneg %p82
        $region18: #{cru_forward.1} parent=11 // pred_check_branch
          %186 = sbr.rel (%p184) target = $region20
        $region19: #{cru_forward.1} parent=11 // pred_region
          _
        $region20: #{cru_forward.1} parent=11 // pred_fallthru
          _
        // Predicated region
        $region21: #{cru_forward.1} parent=11 // pred_check
          %p187 = pneg %p103
        $region22: #{cru_forward.1} parent=11 // pred_check_branch
          %189 = sbr.rel (%p187) target = $region24
        $region23: #{cru_forward.1} parent=11 // pred_region
          _
        $region24: #{cru_forward.1} parent=11 // pred_fallthru
          _
        // Predicated region
        $region25: #{cru_forward.1} parent=11 // pred_check
          %p190 = pneg %p124
        $region26: #{cru_forward.1} parent=11 // pred_check_branch
          %192 = sbr.rel (%p190) target = $region28
        $region27: #{cru_forward.1} parent=11 // pred_region
          _
        $region28: #{cru_forward.1} parent=11 // pred_fallthru
          _
      $region12: #{cru_forward.1} parent=5 // pred_fallthru
        _
      %p193 = scmp.lt.s32.totalorder %s14, 2
      // Predicated region
      $region29: #{cru_forward.1} parent=5 // pred_check
        %p194 = pneg %p193
      $region30: #{cru_forward.1} parent=5 // pred_check_branch
        %196 = sbr.rel (%p194) target = $region32
      $region31: #{cru_forward.1} parent=5 // pred_region
        // Predicated region
        $region33: #{cru_forward.1} parent=31 // pred_check
          %p197 = pneg %p34
        $region34: #{cru_forward.1} parent=31 // pred_check_branch
          %199 = sbr.rel (%p197) target = $region36
        $region35: #{cru_forward.1} parent=31 // pred_region
          %s200 = smul.u32 4, %s14
          %p201 = scmp.lt.s32.totalorder %s200, 7
          %s202 = scalar_select %p201, %s200, 7
          %s203 = smul.addr %s202, 3
          %s204 = smul.addr %s203, 8
          %s205 = scalar_lea.vmem %s0, %s204
          %s206 = smul.u32 4, %s14
        $region36: #{cru_forward.1} parent=31 // pred_fallthru
          _
      $region32: #{cru_forward.1} parent=5 // pred_fallthru
        _
      %p207 = scmp.le.s32.totalorder 1, %s14
      %p208 = scmp.lt.s32.totalorder %s14, 3
      %p209 = pnand %p207, %p208
      %p210 = pneg %p209
      // Predicated region
      $region37: #{cru_forward.1} parent=5 // pred_check
        _
      $region38: #{cru_forward.1} parent=5 // pred_check_branch
        %212 = sbr.rel (%p209) target = $region40
      $region39: #{cru_forward.1} parent=5 // pred_region
        %s213 = ssub.s32 %s14, 1
        %s214 = smul.u32 4, %s19
        %p215 = scmp.lt.s32.totalorder %s214, 7
        %s216 = scalar_select %p215, %s214, 7
        %s217 = smul.addr %s216, 3
        %s218 = smul.addr %s217, 8
        %s219 = scalar_lea.vmem %s0, %s218
        %p220 = pneg %p40
        %p221 = pneg %p37
        %p222 = pneg %p61
        %p223 = pneg %p58
        %p224 = pneg %p82
        %p225 = pneg %p79
        %p226 = pneg %p103
        %p227 = pneg %p100
        %p228 = pneg %p124
        %p229 = pneg %p121
        %p230 = pneg %p145
        %p231 = pneg %p142
        %p232 = pneg %p166
        %p233 = pneg %p163
        %s234 = smul.u32 4, %s19
        %p235 = scmp.lt.s32.totalorder %s234, 7
        %s236 = scalar_select %p235, %s234, 7
        %s237 = smul.addr %s236, 3
        %s238 = smul.addr %s237, 8
        %s239 = scalar_lea.vmem %s0, %s238
        %s240 = smul.u32 4, %s19
        %p241 = scmp.eq.s32.totalorder %s19, 0
        // Predicated region
        $region41: #{cru_forward.1} parent=39 // pred_check
          %p242 = pneg %p241
        $region42: #{cru_forward.1} parent=39 // pred_check_branch
          %244 = sbr.rel (%p242) target = $region44
        $region43: #{cru_forward.1} parent=39 // pred_region
          %245 = vst [vmem:[#allocation2] sm:$0xff] 0.0
          %246 = vst [vmem:[#allocation2 + $0x8] sm:$0xff] 0.0
          %247 = vst [vmem:[#allocation2 + $0x10] sm:$0xff] 0.0
        $region44: #{cru_forward.1} parent=39 // pred_fallthru
          _
        %v248 = vld [vmem:[%s1] sm:$0xff]
        %v249 = vld [vmem:[%s1 + $0x8] sm:$0xff]
        %v250 = vld [vmem:[%s1 + $0x10] sm:$0xff]
        %v251 = vld [vmem:[%s1 + $0x18] sm:$0xff]
        %v252 = vld [vmem:[%s1 + $0x20] sm:$0xff]
        %v253 = vld [vmem:[%s1 + $0x28] sm:$0xff]
        %v254 = vld [vmem:[%s1 + $0x30] sm:$0xff]
        %v255 = vld [vmem:[%s1 + $0x38] sm:$0xff]
        %v256 = vld [vmem:[%s1 + $0x40] sm:$0xff]
        %v257 = vld [vmem:[%s1 + $0x48] sm:$0xff]
        %v258 = vld [vmem:[%s1 + $0x50] sm:$0xff]
        %v259 = vld [vmem:[%s1 + $0x58] sm:$0xff]
        %v260 = vld [vmem:[%s1 + $0x60] sm:$0xff]
        %v261 = vld [vmem:[%s1 + $0x68] sm:$0xff]
        %v262 = vld [vmem:[%s1 + $0x70] sm:$0xff]
        %v263 = vld [vmem:[%s1 + $0x78] sm:$0xff]
        %v264 = vld [vmem:[%s1 + $0x80] sm:$0xff]
        %v265 = vld [vmem:[%s1 + $0x88] sm:$0xff]
        %v266 = vld [vmem:[%s1 + $0x90] sm:$0xff]
        %v267 = vld [vmem:[%s1 + $0x98] sm:$0xff]
        %v268 = vld [vmem:[%s1 + $0xa0] sm:$0xff]
        %v269 = vld [vmem:[%s1 + $0xa8] sm:$0xff]
        %v270 = vld [vmem:[%s1 + $0xb0] sm:$0xff]
        %v271 = vld [vmem:[%s1 + $0xb8] sm:$0xff]
        %v272 = vld [vmem:[%s1 + $0xc0] sm:$0xff]
        %v273 = vld [vmem:[%s1 + $0xc8] sm:$0xff]
        %v274 = vld [vmem:[%s1 + $0xd0] sm:$0xff]
        %v275 = vld [vmem:[%s1 + $0xd8] sm:$0xff]
        %v276 = vld [vmem:[%s1 + $0xe0] sm:$0xff]
        %v277 = vld [vmem:[%s1 + $0xe8] sm:$0xff]
        %v278 = vld [vmem:[%s1 + $0xf0] sm:$0xff]
        %v279 = vld [vmem:[%s1 + $0xf8] sm:$0xff]
        %v280 = vld [vmem:[%s1 + $0x100] sm:$0xff]
        %v281 = vld [vmem:[%s1 + $0x108] sm:$0xff]
        %v282 = vld [vmem:[%s1 + $0x110] sm:$0xff]
        %v283 = vld [vmem:[%s1 + $0x118] sm:$0xff]
        %v284 = vld [vmem:[%s1 + $0x120] sm:$0xff]
        %v285 = vld [vmem:[%s1 + $0x128] sm:$0xff]
        %v286 = vld [vmem:[%s1 + $0x130] sm:$0xff]
        %v287 = vld [vmem:[%s1 + $0x138] sm:$0xff]
        %v288 = vld [vmem:[%s1 + $0x140] sm:$0xff]
        %v289 = vld [vmem:[%s1 + $0x148] sm:$0xff]
        %v290 = vld [vmem:[%s1 + $0x150] sm:$0xff]
        %v291 = vld [vmem:[%s1 + $0x158] sm:$0xff]
        %v292 = vld [vmem:[%s1 + $0x160] sm:$0xff]
        %v293 = vld [vmem:[%s1 + $0x168] sm:$0xff]
        %v294 = vld [vmem:[%s1 + $0x170] sm:$0xff]
        %v295 = vld [vmem:[%s1 + $0x178] sm:$0xff]
        %v296 = vld [vmem:[%s2] sm:$0x1]
        %v298 = vperm.slane %v296, 0
        %v300 = vld [vmem:[#allocation2] sm:$0xff]
        %v301 = vld [vmem:[#allocation2 + $0x8] sm:$0xff]
        %v302 = vld [vmem:[#allocation2 + $0x10] sm:$0xff]
        %v303 = vld [vmem:[%s239] sm:$0xff]
        %v304 = vld [vmem:[%s239 + $0x8] sm:$0xff]
        %v305 = vld [vmem:[%s239 + $0x10] sm:$0xff]
        %306 = vmatpush.msra.mxu0 %v293
        %307 = vmatpush.msra.mxu0 %v290
        %308 = vmatpush.msra.mxu0 %v287
        %309 = vmatpush.msra.mxu0 %v284
        %310 = vmatpush.msra.mxu0 %v281
        %311 = vmatpush.msra.mxu0 %v278
        %312 = vmatpush.msra.mxu0 %v275
        %313 = vmatpush.msra.mxu0 %v272
        %314 = vmatpush.msra.mxu0 %v269
        %315 = vmatpush.msra.mxu0 %v266
        %316 = vmatpush.msra.mxu0 %v263
        %317 = vmatpush.msra.mxu0 %v260
        %318 = vmatpush.msra.mxu0 %v257
        %319 = vmatpush.msra.mxu0 %v254
        %320 = vmatpush.msra.mxu0 %v251
        %321 = vmatpush.msra.mxu0 %v248
        %322 = vmatmul.f32.gmra.mxu0 %v300
        %v323 = vpop.f32.mrf.mxu0
        %v324 = vadd.f32 0.0, %v323
        %325 = vmatmul.f32.gmra.mxu0 %v301
        %v326 = vpop.f32.mrf.mxu0
        %v327 = vadd.f32 0.0, %v326
        %328 = vmatmul.f32.gmra.mxu0 %v302
        %v329 = vpop.f32.mrf.mxu0
        %v330 = vadd.f32 0.0, %v329
        %331 = vdwg.mxu0
        %332 = vmatpush.msra.mxu0 %v294
        %333 = vmatpush.msra.mxu0 %v291
        %334 = vmatpush.msra.mxu0 %v288
        %335 = vmatpush.msra.mxu0 %v285
        %336 = vmatpush.msra.mxu0 %v282
        %337 = vmatpush.msra.mxu0 %v279
        %338 = vmatpush.msra.mxu0 %v276
        %339 = vmatpush.msra.mxu0 %v273
        %340 = vmatpush.msra.mxu0 %v270
        %341 = vmatpush.msra.mxu0 %v267
        %342 = vmatpush.msra.mxu0 %v264
        %343 = vmatpush.msra.mxu0 %v261
        %344 = vmatpush.msra.mxu0 %v258
        %345 = vmatpush.msra.mxu0 %v255
        %346 = vmatpush.msra.mxu0 %v252
        %347 = vmatpush.msra.mxu0 %v249
        %348 = vmatmul.f32.gmra.mxu0 %v300
        %v349 = vpop.f32.mrf.mxu0
        %v350 = vadd.f32 0.0, %v349
        %351 = vmatmul.f32.gmra.mxu0 %v301
        %v352 = vpop.f32.mrf.mxu0
        %v353 = vadd.f32 0.0, %v352
        %354 = vmatmul.f32.gmra.mxu0 %v302
        %v355 = vpop.f32.mrf.mxu0
        %v356 = vadd.f32 0.0, %v355
        %357 = vdwg.mxu0
        %358 = vmatpush.msra.mxu0 %v295
        %359 = vmatpush.msra.mxu0 %v292
        %360 = vmatpush.msra.mxu0 %v289
        %361 = vmatpush.msra.mxu0 %v286
        %362 = vmatpush.msra.mxu0 %v283
        %363 = vmatpush.msra.mxu0 %v280
        %364 = vmatpush.msra.mxu0 %v277
        %365 = vmatpush.msra.mxu0 %v274
        %366 = vmatpush.msra.mxu0 %v271
        %367 = vmatpush.msra.mxu0 %v268
        %368 = vmatpush.msra.mxu0 %v265
        %369 = vmatpush.msra.mxu0 %v262
        %370 = vmatpush.msra.mxu0 %v259
        %371 = vmatpush.msra.mxu0 %v256
        %372 = vmatpush.msra.mxu0 %v253
        %373 = vmatpush.msra.mxu0 %v250
        %374 = vmatmul.f32.gmra.mxu0 %v300
        %v375 = vpop.f32.mrf.mxu0
        %v376 = vadd.f32 0.0, %v375
        %377 = vmatmul.f32.gmra.mxu0 %v301
        %v378 = vpop.f32.mrf.mxu0
        %v379 = vadd.f32 0.0, %v378
        %380 = vmatmul.f32.gmra.mxu0 %v302
        %v381 = vpop.f32.mrf.mxu0
        %v382 = vadd.f32 0.0, %v381
        %383 = vdwg.mxu0
        %v384 = vadd.f32 %v303, %v324
        %v385 = vxor.u32 %v384, 2147483648
        %v386 = vmul.f32 %v385, 1.442695
        %v387 = vpow.pop %v386
        %v388 = vadd.f32 %v387, 1.0
        %v389 = vrcp.pop %v388
        %v390 = vmul.f32 %v388, %v389
        %v391 = vsub.f32 1.0, %v390
        %v392 = vmul.f32 %v389, %v391
        %v393 = vadd.f32 %v389, %v392
        %vm394 = vweird.f32 %v388
        %vm395 = vweird.f32 %v389
        %vm396 = vmor %vm394, %vm395
        %v397 = vsel %vm396, %v389, %v393
        %v398 = vand.u32 2147483647, %v388
        %vm399 = vcmp.eq.f32.partialorder %v398, 8.507059e+37
        %v400 = vand.u32 %v388, 2147483648
        %v401 = vor.u32 1.1754944e-38, %v400
        %v402 = vsel %vm399, %v401, %v397
        %v403 = vmul.f32 1.0, %v402
        %v404 = vadd.f32 %v304, %v350
        %v405 = vxor.u32 %v404, 2147483648
        %v406 = vmul.f32 %v405, 1.442695
        %v407 = vpow.pop %v406
        %v408 = vadd.f32 %v407, 1.0
        %v409 = vrcp.pop %v408
        %v410 = vmul.f32 %v408, %v409
        %v411 = vsub.f32 1.0, %v410
        %v412 = vmul.f32 %v409, %v411
        %v413 = vadd.f32 %v409, %v412
        %vm414 = vweird.f32 %v408
        %vm415 = vweird.f32 %v409
        %vm416 = vmor %vm414, %vm415
        %v417 = vsel %vm416, %v409, %v413
        %v418 = vand.u32 2147483647, %v408
        %vm419 = vcmp.eq.f32.partialorder %v418, 8.507059e+37
        %v420 = vand.u32 %v408, 2147483648
        %v421 = vor.u32 1.1754944e-38, %v420
        %v422 = vsel %vm419, %v421, %v417
        %v423 = vmul.f32 1.0, %v422
        %v424 = vadd.f32 %v376, %v298
        %v425 = vmul.f32 %v403, %v424
        %v426 = vadd.f32 %v305, %v425
        %v427 = vtanh.pop %v426
        %v428 = vsub.f32 1.0, %v423
        %v429 = vmul.f32 %v428, %v427
        %v430 = vmul.f32 %v423, %v300
        %v431 = vadd.f32 %v429, %v430
        %v432 = vadd.f32 %v303, %v327
        %v433 = vxor.u32 %v432, 2147483648
        %v434 = vmul.f32 %v433, 1.442695
        %v435 = vpow.pop %v434
        %v436 = vadd.f32 %v435, 1.0
        %v437 = vrcp.pop %v436
        %v438 = vmul.f32 %v436, %v437
        %v439 = vsub.f32 1.0, %v438
        %v440 = vmul.f32 %v437, %v439
        %v441 = vadd.f32 %v437, %v440
        %vm442 = vweird.f32 %v436
        %vm443 = vweird.f32 %v437
        %vm444 = vmor %vm442, %vm443
        %v445 = vsel %vm444, %v437, %v441
        %v446 = vand.u32 2147483647, %v436
        %vm447 = vcmp.eq.f32.partialorder %v446, 8.507059e+37
        %v448 = vand.u32 %v436, 2147483648
        %v449 = vor.u32 1.1754944e-38, %v448
        %v450 = vsel %vm447, %v449, %v445
        %v451 = vmul.f32 1.0, %v450
        %v452 = vadd.f32 %v304, %v353
        %v453 = vxor.u32 %v452, 2147483648
        %v454 = vmul.f32 %v453, 1.442695
        %v455 = vpow.pop %v454
        %v456 = vadd.f32 %v455, 1.0
        %v457 = vrcp.pop %v456
        %v458 = vmul.f32 %v456, %v457
        %v459 = vsub.f32 1.0, %v458
        %v460 = vmul.f32 %v457, %v459
        %v461 = vadd.f32 %v457, %v460
        %vm462 = vweird.f32 %v456
        %vm463 = vweird.f32 %v457
        %vm464 = vmor %vm462, %vm463
        %v465 = vsel %vm464, %v457, %v461
        %v466 = vand.u32 2147483647, %v456
        %vm467 = vcmp.eq.f32.partialorder %v466, 8.507059e+37
        %v468 = vand.u32 %v456, 2147483648
        %v469 = vor.u32 1.1754944e-38, %v468
        %v470 = vsel %vm467, %v469, %v465
        %v471 = vmul.f32 1.0, %v470
        %v472 = vadd.f32 %v379, %v298
        %v473 = vmul.f32 %v451, %v472
        %v474 = vadd.f32 %v305, %v473
        %v475 = vtanh.pop %v474
        %v476 = vsub.f32 1.0, %v471
        %v477 = vmul.f32 %v476, %v475
        %v478 = vmul.f32 %v471, %v301
        %v479 = vadd.f32 %v477, %v478
        %v480 = vadd.f32 %v303, %v330
        %v481 = vxor.u32 %v480, 2147483648
        %v482 = vmul.f32 %v481, 1.442695
        %v483 = vpow.pop %v482
        %v484 = vadd.f32 %v483, 1.0
        %v485 = vrcp.pop %v484
        %v486 = vmul.f32 %v484, %v485
        %v487 = vsub.f32 1.0, %v486
        %v488 = vmul.f32 %v485, %v487
        %v489 = vadd.f32 %v485, %v488
        %vm490 = vweird.f32 %v484
        %vm491 = vweird.f32 %v485
        %vm492 = vmor %vm490, %vm491
        %v493 = vsel %vm492, %v485, %v489
        %v494 = vand.u32 2147483647, %v484
        %vm495 = vcmp.eq.f32.partialorder %v494, 8.507059e+37
        %v496 = vand.u32 %v484, 2147483648
        %v497 = vor.u32 1.1754944e-38, %v496
        %v498 = vsel %vm495, %v497, %v493
        %v499 = vmul.f32 1.0, %v498
        %v500 = vadd.f32 %v304, %v356
        %v501 = vxor.u32 %v500, 2147483648
        %v502 = vmul.f32 %v501, 1.442695
        %v503 = vpow.pop %v502
        %v504 = vadd.f32 %v503, 1.0
        %v505 = vrcp.pop %v504
        %v506 = vmul.f32 %v504, %v505
        %v507 = vsub.f32 1.0, %v506
        %v508 = vmul.f32 %v505, %v507
        %v509 = vadd.f32 %v505, %v508
        %vm510 = vweird.f32 %v504
        %vm511 = vweird.f32 %v505
        %vm512 = vmor %vm510, %vm511
        %v513 = vsel %vm512, %v505, %v509
        %v514 = vand.u32 2147483647, %v504
        %vm515 = vcmp.eq.f32.partialorder %v514, 8.507059e+37
        %v516 = vand.u32 %v504, 2147483648
        %v517 = vor.u32 1.1754944e-38, %v516
        %v518 = vsel %vm515, %v517, %v513
        %v519 = vmul.f32 1.0, %v518
        %v520 = vadd.f32 %v382, %v298
        %v521 = vmul.f32 %v499, %v520
        %v522 = vadd.f32 %v305, %v521
        %v523 = vtanh.pop %v522
        %v524 = vsub.f32 1.0, %v519
        %v525 = vmul.f32 %v524, %v523
        %v526 = vmul.f32 %v519, %v302
        %v527 = vadd.f32 %v525, %v526
        %s528 = scalar_lea.vmem %s239, 24
        %v529 = vld [vmem:[%s528] sm:$0xff]
        %v530 = vld [vmem:[%s528 + $0x8] sm:$0xff]
        %v531 = vld [vmem:[%s528 + $0x10] sm:$0xff]
        %532 = vmatpush.msra.mxu0 %v293
        %533 = vmatpush.msra.mxu0 %v290
        %534 = vmatpush.msra.mxu0 %v287
        %535 = vmatpush.msra.mxu0 %v284
        %536 = vmatpush.msra.mxu0 %v281
        %537 = vmatpush.msra.mxu0 %v278
        %538 = vmatpush.msra.mxu0 %v275
        %539 = vmatpush.msra.mxu0 %v272
        %540 = vmatpush.msra.mxu0 %v269
        %541 = vmatpush.msra.mxu0 %v266
        %542 = vmatpush.msra.mxu0 %v263
        %543 = vmatpush.msra.mxu0 %v260
        %544 = vmatpush.msra.mxu0 %v257
        %545 = vmatpush.msra.mxu0 %v254
        %546 = vmatpush.msra.mxu0 %v251
        %547 = vmatpush.msra.mxu0 %v248
        %548 = vmatmul.f32.gmra.mxu0 %v431
        %v549 = vpop.f32.mrf.mxu0
        %v550 = vadd.f32 0.0, %v549
        %551 = vmatmul.f32.gmra.mxu0 %v479
        %v552 = vpop.f32.mrf.mxu0
        %v553 = vadd.f32 0.0, %v552
        %554 = vmatmul.f32.gmra.mxu0 %v527
        %v555 = vpop.f32.mrf.mxu0
        %v556 = vadd.f32 0.0, %v555
        %557 = vdwg.mxu0
        %558 = vmatpush.msra.mxu0 %v294
        %559 = vmatpush.msra.mxu0 %v291
        %560 = vmatpush.msra.mxu0 %v288
        %561 = vmatpush.msra.mxu0 %v285
        %562 = vmatpush.msra.mxu0 %v282
        %563 = vmatpush.msra.mxu0 %v279
        %564 = vmatpush.msra.mxu0 %v276
        %565 = vmatpush.msra.mxu0 %v273
        %566 = vmatpush.msra.mxu0 %v270
        %567 = vmatpush.msra.mxu0 %v267
        %568 = vmatpush.msra.mxu0 %v264
        %569 = vmatpush.msra.mxu0 %v261
        %570 = vmatpush.msra.mxu0 %v258
        %571 = vmatpush.msra.mxu0 %v255
        %572 = vmatpush.msra.mxu0 %v252
        %573 = vmatpush.msra.mxu0 %v249
        %574 = vmatmul.f32.gmra.mxu0 %v431
        %v575 = vpop.f32.mrf.mxu0
        %v576 = vadd.f32 0.0, %v575
        %577 = vmatmul.f32.gmra.mxu0 %v479
        %v578 = vpop.f32.mrf.mxu0
        %v579 = vadd.f32 0.0, %v578
        %580 = vmatmul.f32.gmra.mxu0 %v527
        %v581 = vpop.f32.mrf.mxu0
        %v582 = vadd.f32 0.0, %v581
        %583 = vdwg.mxu0
        %584 = vmatpush.msra.mxu0 %v295
        %585 = vmatpush.msra.mxu0 %v292
        %586 = vmatpush.msra.mxu0 %v289
        %587 = vmatpush.msra.mxu0 %v286
        %588 = vmatpush.msra.mxu0 %v283
        %589 = vmatpush.msra.mxu0 %v280
        %590 = vmatpush.msra.mxu0 %v277
        %591 = vmatpush.msra.mxu0 %v274
        %592 = vmatpush.msra.mxu0 %v271
        %593 = vmatpush.msra.mxu0 %v268
        %594 = vmatpush.msra.mxu0 %v265
        %595 = vmatpush.msra.mxu0 %v262
        %596 = vmatpush.msra.mxu0 %v259
        %597 = vmatpush.msra.mxu0 %v256
        %598 = vmatpush.msra.mxu0 %v253
        %599 = vmatpush.msra.mxu0 %v250
        %600 = vmatmul.f32.gmra.mxu0 %v431
        %v601 = vpop.f32.mrf.mxu0
        %v602 = vadd.f32 0.0, %v601
        %603 = vmatmul.f32.gmra.mxu0 %v479
        %v604 = vpop.f32.mrf.mxu0
        %v605 = vadd.f32 0.0, %v604
        %606 = vmatmul.f32.gmra.mxu0 %v527
        %v607 = vpop.f32.mrf.mxu0
        %v608 = vadd.f32 0.0, %v607
        %609 = vdwg.mxu0
        %v610 = vadd.f32 %v529, %v550
        %v611 = vxor.u32 %v610, 2147483648
        %v612 = vmul.f32 %v611, 1.442695
        %v613 = vpow.pop %v612
        %v614 = vadd.f32 %v613, 1.0
        %v615 = vrcp.pop %v614
        %v616 = vmul.f32 %v614, %v615
        %v617 = vsub.f32 1.0, %v616
        %v618 = vmul.f32 %v615, %v617
        %v619 = vadd.f32 %v615, %v618
        %vm620 = vweird.f32 %v614
        %vm621 = vweird.f32 %v615
        %vm622 = vmor %vm620, %vm621
        %v623 = vsel %vm622, %v615, %v619
        %v624 = vand.u32 2147483647, %v614
        %vm625 = vcmp.eq.f32.partialorder %v624, 8.507059e+37
        %v626 = vand.u32 %v614, 2147483648
        %v627 = vor.u32 1.1754944e-38, %v626
        %v628 = vsel %vm625, %v627, %v623
        %v629 = vmul.f32 1.0, %v628
        %v630 = vadd.f32 %v530, %v576
        %v631 = vxor.u32 %v630, 2147483648
        %v632 = vmul.f32 %v631, 1.442695
        %v633 = vpow.pop %v632
        %v634 = vadd.f32 %v633, 1.0
        %v635 = vrcp.pop %v634
        %v636 = vmul.f32 %v634, %v635
        %v637 = vsub.f32 1.0, %v636
        %v638 = vmul.f32 %v635, %v637
        %v639 = vadd.f32 %v635, %v638
        %vm640 = vweird.f32 %v634
        %vm641 = vweird.f32 %v635
        %vm642 = vmor %vm640, %vm641
        %v643 = vsel %vm642, %v635, %v639
        %v644 = vand.u32 2147483647, %v634
        %vm645 = vcmp.eq.f32.partialorder %v644, 8.507059e+37
        %v646 = vand.u32 %v634, 2147483648
        %v647 = vor.u32 1.1754944e-38, %v646
        %v648 = vsel %vm645, %v647, %v643
        %v649 = vmul.f32 1.0, %v648
        %v650 = vadd.f32 %v602, %v298
        %v651 = vmul.f32 %v629, %v650
        %v652 = vadd.f32 %v531, %v651
        %v653 = vtanh.pop %v652
        %v654 = vsub.f32 1.0, %v649
        %v655 = vmul.f32 %v654, %v653
        %v656 = vmul.f32 %v649, %v431
        %v657 = vadd.f32 %v655, %v656
        %v658 = vadd.f32 %v529, %v553
        %v659 = vxor.u32 %v658, 2147483648
        %v660 = vmul.f32 %v659, 1.442695
        %v661 = vpow.pop %v660
        %v662 = vadd.f32 %v661, 1.0
        %v663 = vrcp.pop %v662
        %v664 = vmul.f32 %v662, %v663
        %v665 = vsub.f32 1.0, %v664
        %v666 = vmul.f32 %v663, %v665
        %v667 = vadd.f32 %v663, %v666
        %vm668 = vweird.f32 %v662
        %vm669 = vweird.f32 %v663
        %vm670 = vmor %vm668, %vm669
        %v671 = vsel %vm670, %v663, %v667
        %v672 = vand.u32 2147483647, %v662
        %vm673 = vcmp.eq.f32.partialorder %v672, 8.507059e+37
        %v674 = vand.u32 %v662, 2147483648
        %v675 = vor.u32 1.1754944e-38, %v674
        %v676 = vsel %vm673, %v675, %v671
        %v677 = vmul.f32 1.0, %v676
        %v678 = vadd.f32 %v530, %v579
        %v679 = vxor.u32 %v678, 2147483648
        %v680 = vmul.f32 %v679, 1.442695
        %v681 = vpow.pop %v680
        %v682 = vadd.f32 %v681, 1.0
        %v683 = vrcp.pop %v682
        %v684 = vmul.f32 %v682, %v683
        %v685 = vsub.f32 1.0, %v684
        %v686 = vmul.f32 %v683, %v685
        %v687 = vadd.f32 %v683, %v686
        %vm688 = vweird.f32 %v682
        %vm689 = vweird.f32 %v683
        %vm690 = vmor %vm688, %vm689
        %v691 = vsel %vm690, %v683, %v687
        %v692 = vand.u32 2147483647, %v682
        %vm693 = vcmp.eq.f32.partialorder %v692, 8.507059e+37
        %v694 = vand.u32 %v682, 2147483648
        %v695 = vor.u32 1.1754944e-38, %v694
        %v696 = vsel %vm693, %v695, %v691
        %v697 = vmul.f32 1.0, %v696
        %v698 = vadd.f32 %v605, %v298
        %v699 = vmul.f32 %v677, %v698
        %v700 = vadd.f32 %v531, %v699
        %v701 = vtanh.pop %v700
        %v702 = vsub.f32 1.0, %v697
        %v703 = vmul.f32 %v702, %v701
        %v704 = vmul.f32 %v697, %v479
        %v705 = vadd.f32 %v703, %v704
        %v706 = vadd.f32 %v529, %v556
        %v707 = vxor.u32 %v706, 2147483648
        %v708 = vmul.f32 %v707, 1.442695
        %v709 = vpow.pop %v708
        %v710 = vadd.f32 %v709, 1.0
        %v711 = vrcp.pop %v710
        %v712 = vmul.f32 %v710, %v711
        %v713 = vsub.f32 1.0, %v712
        %v714 = vmul.f32 %v711, %v713
        %v715 = vadd.f32 %v711, %v714
        %vm716 = vweird.f32 %v710
        %vm717 = vweird.f32 %v711
        %vm718 = vmor %vm716, %vm717
        %v719 = vsel %vm718, %v711, %v715
        %v720 = vand.u32 2147483647, %v710
        %vm721 = vcmp.eq.f32.partialorder %v720, 8.507059e+37
        %v722 = vand.u32 %v710, 2147483648
        %v723 = vor.u32 1.1754944e-38, %v722
        %v724 = vsel %vm721, %v723, %v719
        %v725 = vmul.f32 1.0, %v724
        %v726 = vadd.f32 %v530, %v582
        %v727 = vxor.u32 %v726, 2147483648
        %v728 = vmul.f32 %v727, 1.442695
        %v729 = vpow.pop %v728
        %v730 = vadd.f32 %v729, 1.0
        %v731 = vrcp.pop %v730
        %v732 = vmul.f32 %v730, %v731
        %v733 = vsub.f32 1.0, %v732
        %v734 = vmul.f32 %v731, %v733
        %v735 = vadd.f32 %v731, %v734
        %vm736 = vweird.f32 %v730
        %vm737 = vweird.f32 %v731
        %vm738 = vmor %vm736, %vm737
        %v739 = vsel %vm738, %v731, %v735
        %v740 = vand.u32 2147483647, %v730
        %vm741 = vcmp.eq.f32.partialorder %v740, 8.507059e+37
        %v742 = vand.u32 %v730, 2147483648
        %v743 = vor.u32 1.1754944e-38, %v742
        %v744 = vsel %vm741, %v743, %v739
        %v745 = vmul.f32 1.0, %v744
        %v746 = vadd.f32 %v608, %v298
        %v747 = vmul.f32 %v725, %v746
        %v748 = vadd.f32 %v531, %v747
        %v749 = vtanh.pop %v748
        %v750 = vsub.f32 1.0, %v745
        %v751 = vmul.f32 %v750, %v749
        %v752 = vmul.f32 %v745, %v527
        %v753 = vadd.f32 %v751, %v752
        %s754 = scalar_lea.vmem %s239, 48
        %v755 = vld [vmem:[%s754] sm:$0xff]
        %v756 = vld [vmem:[%s754 + $0x8] sm:$0xff]
        %v757 = vld [vmem:[%s754 + $0x10] sm:$0xff]
        %758 = vmatpush.msra.mxu0 %v293
        %759 = vmatpush.msra.mxu0 %v290
        %760 = vmatpush.msra.mxu0 %v287
        %761 = vmatpush.msra.mxu0 %v284
        %762 = vmatpush.msra.mxu0 %v281
        %763 = vmatpush.msra.mxu0 %v278
        %764 = vmatpush.msra.mxu0 %v275
        %765 = vmatpush.msra.mxu0 %v272
        %766 = vmatpush.msra.mxu0 %v269
        %767 = vmatpush.msra.mxu0 %v266
        %768 = vmatpush.msra.mxu0 %v263
        %769 = vmatpush.msra.mxu0 %v260
        %770 = vmatpush.msra.mxu0 %v257
        %771 = vmatpush.msra.mxu0 %v254
        %772 = vmatpush.msra.mxu0 %v251
        %773 = vmatpush.msra.mxu0 %v248
        %774 = vmatmul.f32.gmra.mxu0 %v657
        %v775 = vpop.f32.mrf.mxu0
        %v776 = vadd.f32 0.0, %v775
        %777 = vmatmul.f32.gmra.mxu0 %v705
        %v778 = vpop.f32.mrf.mxu0
        %v779 = vadd.f32 0.0, %v778
        %780 = vmatmul.f32.gmra.mxu0 %v753
        %v781 = vpop.f32.mrf.mxu0
        %v782 = vadd.f32 0.0, %v781
        %783 = vdwg.mxu0
        %784 = vmatpush.msra.mxu0 %v294
        %785 = vmatpush.msra.mxu0 %v291
        %786 = vmatpush.msra.mxu0 %v288
        %787 = vmatpush.msra.mxu0 %v285
        %788 = vmatpush.msra.mxu0 %v282
        %789 = vmatpush.msra.mxu0 %v279
        %790 = vmatpush.msra.mxu0 %v276
        %791 = vmatpush.msra.mxu0 %v273
        %792 = vmatpush.msra.mxu0 %v270
        %793 = vmatpush.msra.mxu0 %v267
        %794 = vmatpush.msra.mxu0 %v264
        %795 = vmatpush.msra.mxu0 %v261
        %796 = vmatpush.msra.mxu0 %v258
        %797 = vmatpush.msra.mxu0 %v255
        %798 = vmatpush.msra.mxu0 %v252
        %799 = vmatpush.msra.mxu0 %v249
        %800 = vmatmul.f32.gmra.mxu0 %v657
        %v801 = vpop.f32.mrf.mxu0
        %v802 = vadd.f32 0.0, %v801
        %803 = vmatmul.f32.gmra.mxu0 %v705
        %v804 = vpop.f32.mrf.mxu0
        %v805 = vadd.f32 0.0, %v804
        %806 = vmatmul.f32.gmra.mxu0 %v753
        %v807 = vpop.f32.mrf.mxu0
        %v808 = vadd.f32 0.0, %v807
        %809 = vdwg.mxu0
        %810 = vmatpush.msra.mxu0 %v295
        %811 = vmatpush.msra.mxu0 %v292
        %812 = vmatpush.msra.mxu0 %v289
        %813 = vmatpush.msra.mxu0 %v286
        %814 = vmatpush.msra.mxu0 %v283
        %815 = vmatpush.msra.mxu0 %v280
        %816 = vmatpush.msra.mxu0 %v277
        %817 = vmatpush.msra.mxu0 %v274
        %818 = vmatpush.msra.mxu0 %v271
        %819 = vmatpush.msra.mxu0 %v268
        %820 = vmatpush.msra.mxu0 %v265
        %821 = vmatpush.msra.mxu0 %v262
        %822 = vmatpush.msra.mxu0 %v259
        %823 = vmatpush.msra.mxu0 %v256
        %824 = vmatpush.msra.mxu0 %v253
        %825 = vmatpush.msra.mxu0 %v250
        %826 = vmatmul.f32.gmra.mxu0 %v657
        %v827 = vpop.f32.mrf.mxu0
        %v828 = vadd.f32 0.0, %v827
        %829 = vmatmul.f32.gmra.mxu0 %v705
        %v830 = vpop.f32.mrf.mxu0
        %v831 = vadd.f32 0.0, %v830
        %832 = vmatmul.f32.gmra.mxu0 %v753
        %v833 = vpop.f32.mrf.mxu0
        %v834 = vadd.f32 0.0, %v833
        %835 = vdwg.mxu0
        %v836 = vadd.f32 %v755, %v776
        %v837 = vxor.u32 %v836, 2147483648
        %v838 = vmul.f32 %v837, 1.442695
        %v839 = vpow.pop %v838
        %v840 = vadd.f32 %v839, 1.0
        %v841 = vrcp.pop %v840
        %v842 = vmul.f32 %v840, %v841
        %v843 = vsub.f32 1.0, %v842
        %v844 = vmul.f32 %v841, %v843
        %v845 = vadd.f32 %v841, %v844
        %vm846 = vweird.f32 %v840
        %vm847 = vweird.f32 %v841
        %vm848 = vmor %vm846, %vm847
        %v849 = vsel %vm848, %v841, %v845
        %v850 = vand.u32 2147483647, %v840
        %vm851 = vcmp.eq.f32.partialorder %v850, 8.507059e+37
        %v852 = vand.u32 %v840, 2147483648
        %v853 = vor.u32 1.1754944e-38, %v852
        %v854 = vsel %vm851, %v853, %v849
        %v855 = vmul.f32 1.0, %v854
        %v856 = vadd.f32 %v756, %v802
        %v857 = vxor.u32 %v856, 2147483648
        %v858 = vmul.f32 %v857, 1.442695
        %v859 = vpow.pop %v858
        %v860 = vadd.f32 %v859, 1.0
        %v861 = vrcp.pop %v860
        %v862 = vmul.f32 %v860, %v861
        %v863 = vsub.f32 1.0, %v862
        %v864 = vmul.f32 %v861, %v863
        %v865 = vadd.f32 %v861, %v864
        %vm866 = vweird.f32 %v860
        %vm867 = vweird.f32 %v861
        %vm868 = vmor %vm866, %vm867
        %v869 = vsel %vm868, %v861, %v865
        %v870 = vand.u32 2147483647, %v860
        %vm871 = vcmp.eq.f32.partialorder %v870, 8.507059e+37
        %v872 = vand.u32 %v860, 2147483648
        %v873 = vor.u32 1.1754944e-38, %v872
        %v874 = vsel %vm871, %v873, %v869
        %v875 = vmul.f32 1.0, %v874
        %v876 = vadd.f32 %v828, %v298
        %v877 = vmul.f32 %v855, %v876
        %v878 = vadd.f32 %v757, %v877
        %v879 = vtanh.pop %v878
        %v880 = vsub.f32 1.0, %v875
        %v881 = vmul.f32 %v880, %v879
        %v882 = vmul.f32 %v875, %v657
        %v883 = vadd.f32 %v881, %v882
        %v884 = vadd.f32 %v755, %v779
        %v885 = vxor.u32 %v884, 2147483648
        %v886 = vmul.f32 %v885, 1.442695
        %v887 = vpow.pop %v886
        %v888 = vadd.f32 %v887, 1.0
        %v889 = vrcp.pop %v888
        %v890 = vmul.f32 %v888, %v889
        %v891 = vsub.f32 1.0, %v890
        %v892 = vmul.f32 %v889, %v891
        %v893 = vadd.f32 %v889, %v892
        %vm894 = vweird.f32 %v888
        %vm895 = vweird.f32 %v889
        %vm896 = vmor %vm894, %vm895
        %v897 = vsel %vm896, %v889, %v893
        %v898 = vand.u32 2147483647, %v888
        %vm899 = vcmp.eq.f32.partialorder %v898, 8.507059e+37
        %v900 = vand.u32 %v888, 2147483648
        %v901 = vor.u32 1.1754944e-38, %v900
        %v902 = vsel %vm899, %v901, %v897
        %v903 = vmul.f32 1.0, %v902
        %v904 = vadd.f32 %v756, %v805
        %v905 = vxor.u32 %v904, 2147483648
        %v906 = vmul.f32 %v905, 1.442695
        %v907 = vpow.pop %v906
        %v908 = vadd.f32 %v907, 1.0
        %v909 = vrcp.pop %v908
        %v910 = vmul.f32 %v908, %v909
        %v911 = vsub.f32 1.0, %v910
        %v912 = vmul.f32 %v909, %v911
        %v913 = vadd.f32 %v909, %v912
        %vm914 = vweird.f32 %v908
        %vm915 = vweird.f32 %v909
        %vm916 = vmor %vm914, %vm915
        %v917 = vsel %vm916, %v909, %v913
        %v918 = vand.u32 2147483647, %v908
        %vm919 = vcmp.eq.f32.partialorder %v918, 8.507059e+37
        %v920 = vand.u32 %v908, 2147483648
        %v921 = vor.u32 1.1754944e-38, %v920
        %v922 = vsel %vm919, %v921, %v917
        %v923 = vmul.f32 1.0, %v922
        %v924 = vadd.f32 %v831, %v298
        %v925 = vmul.f32 %v903, %v924
        %v926 = vadd.f32 %v757, %v925
        %v927 = vtanh.pop %v926
        %v928 = vsub.f32 1.0, %v923
        %v929 = vmul.f32 %v928, %v927
        %v930 = vmul.f32 %v923, %v705
        %v931 = vadd.f32 %v929, %v930
        %v932 = vadd.f32 %v755, %v782
        %v933 = vxor.u32 %v932, 2147483648
        %v934 = vmul.f32 %v933, 1.442695
        %v935 = vpow.pop %v934
        %v936 = vadd.f32 %v935, 1.0
        %v937 = vrcp.pop %v936
        %v938 = vmul.f32 %v936, %v937
        %v939 = vsub.f32 1.0, %v938
        %v940 = vmul.f32 %v937, %v939
        %v941 = vadd.f32 %v937, %v940
        %vm942 = vweird.f32 %v936
        %vm943 = vweird.f32 %v937
        %vm944 = vmor %vm942, %vm943
        %v945 = vsel %vm944, %v937, %v941
        %v946 = vand.u32 2147483647, %v936
        %vm947 = vcmp.eq.f32.partialorder %v946, 8.507059e+37
        %v948 = vand.u32 %v936, 2147483648
        %v949 = vor.u32 1.1754944e-38, %v948
        %v950 = vsel %vm947, %v949, %v945
        %v951 = vmul.f32 1.0, %v950
        %v952 = vadd.f32 %v756, %v808
        %v953 = vxor.u32 %v952, 2147483648
        %v954 = vmul.f32 %v953, 1.442695
        %v955 = vpow.pop %v954
        %v956 = vadd.f32 %v955, 1.0
        %v957 = vrcp.pop %v956
        %v958 = vmul.f32 %v956, %v957
        %v959 = vsub.f32 1.0, %v958
        %v960 = vmul.f32 %v957, %v959
        %v961 = vadd.f32 %v957, %v960
        %vm962 = vweird.f32 %v956
        %vm963 = vweird.f32 %v957
        %vm964 = vmor %vm962, %vm963
        %v965 = vsel %vm964, %v957, %v961
        %v966 = vand.u32 2147483647, %v956
        %vm967 = vcmp.eq.f32.partialorder %v966, 8.507059e+37
        %v968 = vand.u32 %v956, 2147483648
        %v969 = vor.u32 1.1754944e-38, %v968
        %v970 = vsel %vm967, %v969, %v965
        %v971 = vmul.f32 1.0, %v970
        %v972 = vadd.f32 %v834, %v298
        %v973 = vmul.f32 %v951, %v972
        %v974 = vadd.f32 %v757, %v973
        %v975 = vtanh.pop %v974
        %v976 = vsub.f32 1.0, %v971
        %v977 = vmul.f32 %v976, %v975
        %v978 = vmul.f32 %v971, %v753
        %v979 = vadd.f32 %v977, %v978
        %s980 = scalar_lea.vmem %s239, 72
        %v981 = vld [vmem:[%s980] sm:$0xff]
        %v982 = vld [vmem:[%s980 + $0x8] sm:$0xff]
        %v983 = vld [vmem:[%s980 + $0x10] sm:$0xff]
        %984 = vmatpush.msra.mxu0 %v293
        %985 = vmatpush.msra.mxu0 %v290
        %986 = vmatpush.msra.mxu0 %v287
        %987 = vmatpush.msra.mxu0 %v284
        %988 = vmatpush.msra.mxu0 %v281
        %989 = vmatpush.msra.mxu0 %v278
        %990 = vmatpush.msra.mxu0 %v275
        %991 = vmatpush.msra.mxu0 %v272
        %992 = vmatpush.msra.mxu0 %v269
        %993 = vmatpush.msra.mxu0 %v266
        %994 = vmatpush.msra.mxu0 %v263
        %995 = vmatpush.msra.mxu0 %v260
        %996 = vmatpush.msra.mxu0 %v257
        %997 = vmatpush.msra.mxu0 %v254
        %998 = vmatpush.msra.mxu0 %v251
        %999 = vmatpush.msra.mxu0 %v248
        %1000 = vmatmul.f32.gmra.mxu0 %v883
        %v1001 = vpop.f32.mrf.mxu0
        %v1002 = vadd.f32 0.0, %v1001
        %1003 = vmatmul.f32.gmra.mxu0 %v931
        %v1004 = vpop.f32.mrf.mxu0
        %v1005 = vadd.f32 0.0, %v1004
        %1006 = vmatmul.f32.gmra.mxu0 %v979
        %v1007 = vpop.f32.mrf.mxu0
        %v1008 = vadd.f32 0.0, %v1007
        %1009 = vdwg.mxu0
        %1010 = vmatpush.msra.mxu0 %v294
        %1011 = vmatpush.msra.mxu0 %v291
        %1012 = vmatpush.msra.mxu0 %v288
        %1013 = vmatpush.msra.mxu0 %v285
        %1014 = vmatpush.msra.mxu0 %v282
        %1015 = vmatpush.msra.mxu0 %v279
        %1016 = vmatpush.msra.mxu0 %v276
        %1017 = vmatpush.msra.mxu0 %v273
        %1018 = vmatpush.msra.mxu0 %v270
        %1019 = vmatpush.msra.mxu0 %v267
        %1020 = vmatpush.msra.mxu0 %v264
        %1021 = vmatpush.msra.mxu0 %v261
        %1022 = vmatpush.msra.mxu0 %v258
        %1023 = vmatpush.msra.mxu0 %v255
        %1024 = vmatpush.msra.mxu0 %v252
        %1025 = vmatpush.msra.mxu0 %v249
        %1026 = vmatmul.f32.gmra.mxu0 %v883
        %v1027 = vpop.f32.mrf.mxu0
        %v1028 = vadd.f32 0.0, %v1027
        %1029 = vmatmul.f32.gmra.mxu0 %v931
        %v1030 = vpop.f32.mrf.mxu0
        %v1031 = vadd.f32 0.0, %v1030
        %1032 = vmatmul.f32.gmra.mxu0 %v979
        %v1033 = vpop.f32.mrf.mxu0
        %v1034 = vadd.f32 0.0, %v1033
        %1035 = vdwg.mxu0
        %1036 = vmatpush.msra.mxu0 %v295
        %1037 = vmatpush.msra.mxu0 %v292
        %1038 = vmatpush.msra.mxu0 %v289
        %1039 = vmatpush.msra.mxu0 %v286
        %1040 = vmatpush.msra.mxu0 %v283
        %1041 = vmatpush.msra.mxu0 %v280
        %1042 = vmatpush.msra.mxu0 %v277
        %1043 = vmatpush.msra.mxu0 %v274
        %1044 = vmatpush.msra.mxu0 %v271
        %1045 = vmatpush.msra.mxu0 %v268
        %1046 = vmatpush.msra.mxu0 %v265
        %1047 = vmatpush.msra.mxu0 %v262
        %1048 = vmatpush.msra.mxu0 %v259
        %1049 = vmatpush.msra.mxu0 %v256
        %1050 = vmatpush.msra.mxu0 %v253
        %1051 = vmatpush.msra.mxu0 %v250
        %1052 = vmatmul.f32.gmra.mxu0 %v883
        %v1053 = vpop.f32.mrf.mxu0
        %v1054 = vadd.f32 0.0, %v1053
        %1055 = vmatmul.f32.gmra.mxu0 %v931
        %v1056 = vpop.f32.mrf.mxu0
        %v1057 = vadd.f32 0.0, %v1056
        %1058 = vmatmul.f32.gmra.mxu0 %v979
        %v1059 = vpop.f32.mrf.mxu0
        %v1060 = vadd.f32 0.0, %v1059
        %1061 = vdwg.mxu0
        %v1062 = vadd.f32 %v981, %v1002
        %v1063 = vxor.u32 %v1062, 2147483648
        %v1064 = vmul.f32 %v1063, 1.442695
        %v1065 = vpow.pop %v1064
        %v1066 = vadd.f32 %v1065, 1.0
        %v1067 = vrcp.pop %v1066
        %v1068 = vmul.f32 %v1066, %v1067
        %v1069 = vsub.f32 1.0, %v1068
        %v1070 = vmul.f32 %v1067, %v1069
        %v1071 = vadd.f32 %v1067, %v1070
        %vm1072 = vweird.f32 %v1066
        %vm1073 = vweird.f32 %v1067
        %vm1074 = vmor %vm1072, %vm1073
        %v1075 = vsel %vm1074, %v1067, %v1071
        %v1076 = vand.u32 2147483647, %v1066
        %vm1077 = vcmp.eq.f32.partialorder %v1076, 8.507059e+37
        %v1078 = vand.u32 %v1066, 2147483648
        %v1079 = vor.u32 1.1754944e-38, %v1078
        %v1080 = vsel %vm1077, %v1079, %v1075
        %v1081 = vmul.f32 1.0, %v1080
        %v1082 = vadd.f32 %v982, %v1028
        %v1083 = vxor.u32 %v1082, 2147483648
        %v1084 = vmul.f32 %v1083, 1.442695
        %v1085 = vpow.pop %v1084
        %v1086 = vadd.f32 %v1085, 1.0
        %v1087 = vrcp.pop %v1086
        %v1088 = vmul.f32 %v1086, %v1087
        %v1089 = vsub.f32 1.0, %v1088
        %v1090 = vmul.f32 %v1087, %v1089
        %v1091 = vadd.f32 %v1087, %v1090
        %vm1092 = vweird.f32 %v1086
        %vm1093 = vweird.f32 %v1087
        %vm1094 = vmor %vm1092, %vm1093
        %v1095 = vsel %vm1094, %v1087, %v1091
        %v1096 = vand.u32 2147483647, %v1086
        %vm1097 = vcmp.eq.f32.partialorder %v1096, 8.507059e+37
        %v1098 = vand.u32 %v1086, 2147483648
        %v1099 = vor.u32 1.1754944e-38, %v1098
        %v1100 = vsel %vm1097, %v1099, %v1095
        %v1101 = vmul.f32 1.0, %v1100
        %v1102 = vadd.f32 %v1054, %v298
        %v1103 = vmul.f32 %v1081, %v1102
        %v1104 = vadd.f32 %v983, %v1103
        %v1105 = vtanh.pop %v1104
        %v1106 = vsub.f32 1.0, %v1101
        %v1107 = vmul.f32 %v1106, %v1105
        %v1108 = vmul.f32 %v1101, %v883
        %v1109 = vadd.f32 %v1107, %v1108
        %v1110 = vadd.f32 %v981, %v1005
        %v1111 = vxor.u32 %v1110, 2147483648
        %v1112 = vmul.f32 %v1111, 1.442695
        %v1113 = vpow.pop %v1112
        %v1114 = vadd.f32 %v1113, 1.0
        %v1115 = vrcp.pop %v1114
        %v1116 = vmul.f32 %v1114, %v1115
        %v1117 = vsub.f32 1.0, %v1116
        %v1118 = vmul.f32 %v1115, %v1117
        %v1119 = vadd.f32 %v1115, %v1118
        %vm1120 = vweird.f32 %v1114
        %vm1121 = vweird.f32 %v1115
        %vm1122 = vmor %vm1120, %vm1121
        %v1123 = vsel %vm1122, %v1115, %v1119
        %v1124 = vand.u32 2147483647, %v1114
        %vm1125 = vcmp.eq.f32.partialorder %v1124, 8.507059e+37
        %v1126 = vand.u32 %v1114, 2147483648
        %v1127 = vor.u32 1.1754944e-38, %v1126
        %v1128 = vsel %vm1125, %v1127, %v1123
        %v1129 = vmul.f32 1.0, %v1128
        %v1130 = vadd.f32 %v982, %v1031
        %v1131 = vxor.u32 %v1130, 2147483648
        %v1132 = vmul.f32 %v1131, 1.442695
        %v1133 = vpow.pop %v1132
        %v1134 = vadd.f32 %v1133, 1.0
        %v1135 = vrcp.pop %v1134
        %v1136 = vmul.f32 %v1134, %v1135
        %v1137 = vsub.f32 1.0, %v1136
        %v1138 = vmul.f32 %v1135, %v1137
        %v1139 = vadd.f32 %v1135, %v1138
        %vm1140 = vweird.f32 %v1134
        %vm1141 = vweird.f32 %v1135
        %vm1142 = vmor %vm1140, %vm1141
        %v1143 = vsel %vm1142, %v1135, %v1139
        %v1144 = vand.u32 2147483647, %v1134
        %vm1145 = vcmp.eq.f32.partialorder %v1144, 8.507059e+37
        %v1146 = vand.u32 %v1134, 2147483648
        %v1147 = vor.u32 1.1754944e-38, %v1146
        %v1148 = vsel %vm1145, %v1147, %v1143
        %v1149 = vmul.f32 1.0, %v1148
        %v1150 = vadd.f32 %v1057, %v298
        %v1151 = vmul.f32 %v1129, %v1150
        %v1152 = vadd.f32 %v983, %v1151
        %v1153 = vtanh.pop %v1152
        %v1154 = vsub.f32 1.0, %v1149
        %v1155 = vmul.f32 %v1154, %v1153
        %v1156 = vmul.f32 %v1149, %v931
        %v1157 = vadd.f32 %v1155, %v1156
        %v1158 = vadd.f32 %v981, %v1008
        %v1159 = vxor.u32 %v1158, 2147483648
        %v1160 = vmul.f32 %v1159, 1.442695
        %v1161 = vpow.pop %v1160
        %v1162 = vadd.f32 %v1161, 1.0
        %v1163 = vrcp.pop %v1162
        %v1164 = vmul.f32 %v1162, %v1163
        %v1165 = vsub.f32 1.0, %v1164
        %v1166 = vmul.f32 %v1163, %v1165
        %v1167 = vadd.f32 %v1163, %v1166
        %vm1168 = vweird.f32 %v1162
        %vm1169 = vweird.f32 %v1163
        %vm1170 = vmor %vm1168, %vm1169
        %v1171 = vsel %vm1170, %v1163, %v1167
        %v1172 = vand.u32 2147483647, %v1162
        %vm1173 = vcmp.eq.f32.partialorder %v1172, 8.507059e+37
        %v1174 = vand.u32 %v1162, 2147483648
        %v1175 = vor.u32 1.1754944e-38, %v1174
        %v1176 = vsel %vm1173, %v1175, %v1171
        %v1177 = vmul.f32 1.0, %v1176
        %v1178 = vadd.f32 %v982, %v1034
        %v1179 = vxor.u32 %v1178, 2147483648
        %v1180 = vmul.f32 %v1179, 1.442695
        %v1181 = vpow.pop %v1180
        %v1182 = vadd.f32 %v1181, 1.0
        %v1183 = vrcp.pop %v1182
        %v1184 = vmul.f32 %v1182, %v1183
        %v1185 = vsub.f32 1.0, %v1184
        %v1186 = vmul.f32 %v1183, %v1185
        %v1187 = vadd.f32 %v1183, %v1186
        %vm1188 = vweird.f32 %v1182
        %vm1189 = vweird.f32 %v1183
        %vm1190 = vmor %vm1188, %vm1189
        %v1191 = vsel %vm1190, %v1183, %v1187
        %v1192 = vand.u32 2147483647, %v1182
        %vm1193 = vcmp.eq.f32.partialorder %v1192, 8.507059e+37
        %v1194 = vand.u32 %v1182, 2147483648
        %v1195 = vor.u32 1.1754944e-38, %v1194
        %v1196 = vsel %vm1193, %v1195, %v1191
        %v1197 = vmul.f32 1.0, %v1196
        %v1198 = vadd.f32 %v1060, %v298
        %v1199 = vmul.f32 %v1177, %v1198
        %v1200 = vadd.f32 %v983, %v1199
        %v1201 = vtanh.pop %v1200
        %v1202 = vsub.f32 1.0, %v1197
        %v1203 = vmul.f32 %v1202, %v1201
        %v1204 = vmul.f32 %v1197, %v979
        %v1205 = vadd.f32 %v1203, %v1204
        %1206 = vst [vmem:[#allocation2] sm:$0xff] %v1109
        %1207 = vst [vmem:[#allocation2 + $0x8] sm:$0xff] %v1157
        %1208 = vst [vmem:[#allocation2 + $0x10] sm:$0xff] %v1205
        %p1209 = scmp.eq.s32.totalorder %s19, 1
        // Predicated region
        $region45: #{cru_forward.1} parent=39 // pred_check
          %p1210 = pneg %p1209
        $region46: #{cru_forward.1} parent=39 // pred_check_branch
          %1212 = sbr.rel (%p1210) target = $region48
        $region47: #{cru_forward.1} parent=39 // pred_region
          %v1213 = vld [vmem:[#allocation2] sm:$0xff]
          %v1214 = vld [vmem:[#allocation2 + $0x8] sm:$0xff]
          %v1215 = vld [vmem:[#allocation2 + $0x10] sm:$0xff]
          %v1216 = vlaneseq
          %v1217 = vshrl.u32 %v1216, 7
          %vm1218 = vcmp.lt.s32.totalorder %v1217, 4
          %v1219 = vsel %vm1218, %v1213, 0.0
          %v1220 = vrot.slane %v1219, 4
          %v1221 = vadd.f32 %v1219, %v1220
          %v1222 = vrot.slane %v1221, 2
          %v1223 = vadd.f32 %v1221, %v1222
          %v1224 = vrot.slane %v1223, 1
          %v1225 = vadd.f32 %v1223, %v1224
          %v1226 = vmul.f32 %v1225, 0.25
          %v1227 = vadd.f32 %v1213, 0.0
          %v1228 = vsel %vm1218, %v1214, 0.0
          %v1229 = vrot.slane %v1228, 4
          %v1230 = vadd.f32 %v1228, %v1229
          %v1231 = vrot.slane %v1230, 2
          %v1232 = vadd.f32 %v1230, %v1231
          %v1233 = vrot.slane %v1232, 1
          %v1234 = vadd.f32 %v1232, %v1233
          %v1235 = vmul.f32 %v1234, 0.25
          %v1236 = vadd.f32 %v1227, %v1214
          %v1237 = vsel %vm1218, %v1215, 0.0
          %v1238 = vrot.slane %v1237, 4
          %v1239 = vadd.f32 %v1237, %v1238
          %v1240 = vrot.slane %v1239, 2
          %v1241 = vadd.f32 %v1239, %v1240
          %v1242 = vrot.slane %v1241, 1
          %v1243 = vadd.f32 %v1241, %v1242
          %v1244 = vmul.f32 %v1243, 0.25
          %v1245 = vadd.f32 %v1236, %v1215
          %vm1246 = vcmask 1040384
          %v1247 = vsel %vm1246, %v1226, %v1235
          %vm1248 = vcmask 1041408
          %v1249 = vsel %vm1248, %v1247, %v1244
          %1250 = vst [vmem:[#allocation3] sm:$0x7] %v1249
          %v1251 = vld [vmem:[%s3] sm:$0xff]
          %v1252 = vld [vmem:[%s3 + $0x8] sm:$0xff]
          %v1253 = vld [vmem:[%s3 + $0x10] sm:$0xff]
          %v1254 = vld [vmem:[%s3 + $0x18] sm:$0xff]
          %v1255 = vld [vmem:[%s3 + $0x20] sm:$0xff]
          %v1256 = vld [vmem:[%s3 + $0x28] sm:$0xff]
          %v1257 = vld [vmem:[%s3 + $0x30] sm:$0xff]
          %v1258 = vld [vmem:[%s3 + $0x38] sm:$0xff]
          %v1259 = vld [vmem:[%s3 + $0x40] sm:$0xff]
          %v1260 = vld [vmem:[%s3 + $0x48] sm:$0xff]
          %v1261 = vld [vmem:[%s3 + $0x50] sm:$0xff]
          %v1262 = vld [vmem:[%s3 + $0x58] sm:$0xff]
          %v1263 = vld [vmem:[%s3 + $0x60] sm:$0xff]
          %v1264 = vld [vmem:[%s3 + $0x68] sm:$0xff]
          %v1265 = vld [vmem:[%s3 + $0x70] sm:$0xff]
          %v1266 = vld [vmem:[%s3 + $0x78] sm:$0xff]
          %v1267 = vld [vmem:[%s4] sm:$0x1]
          %v1269 = vperm.slane %v1267, 0
          %1271 = vmatpush.msra.mxu0 %v1266
          %1272 = vmatpush.msra.mxu0 %v1265
          %1273 = vmatpush.msra.mxu0 %v1264
          %1274 = vmatpush.msra.mxu0 %v1263
          %1275 = vmatpush.msra.mxu0 %v1262
          %1276 = vmatpush.msra.mxu0 %v1261
          %1277 = vmatpush.msra.mxu0 %v1260
          %1278 = vmatpush.msra.mxu0 %v1259
          %1279 = vmatpush.msra.mxu0 %v1258
          %1280 = vmatpush.msra.mxu0 %v1257
          %1281 = vmatpush.msra.mxu0 %v1256
          %1282 = vmatpush.msra.mxu0 %v1255
          %1283 = vmatpush.msra.mxu0 %v1254
          %1284 = vmatpush.msra.mxu0 %v1253
          %1285 = vmatpush.msra.mxu0 %v1252
          %1286 = vmatpush.msra.mxu0 %v1251
          %1287 = vmatmul.f32.gmra.mxu0 %v1245
          %v1288 = vpop.f32.mrf.mxu0
          %v1289 = vadd.f32 %v1269, %v1288
          %1290 = vdwg.mxu0
          %vm1291 = vcmp.gt.f32.partialorder %v1289, 0.0
          %v1292 = vmin.f32 %v1289, 0.0
          %v1293 = vmul.f32 %v1292, 1.442695
          %v1294 = vpow.pop %v1293
          %v1295 = vsub.f32 %v1294, 1.0
          %v1296 = vsel %vm1291, %v1289, %v1295
          %1297 = vst [vmem:[%s5] sm:$0xff] %v1296
        $region48: #{cru_forward.1} parent=39 // pred_fallthru
          _
        // Predicated region
        $region49: #{cru_forward.1} parent=39 // pred_check
          %p1298 = pneg %p142
        $region50: #{cru_forward.1} parent=39 // pred_check_branch
          %1300 = sbr.rel (%p1298) target = $region52
        $region51: #{cru_forward.1} parent=39 // pred_region
          _
        $region52: #{cru_forward.1} parent=39 // pred_fallthru
          _
        // Predicated region
        $region53: #{cru_forward.1} parent=39 // pred_check
          %p1301 = pneg %p163
        $region54: #{cru_forward.1} parent=39 // pred_check_branch
          %1303 = sbr.rel (%p1301) target = $region56
        $region55: #{cru_forward.1} parent=39 // pred_region
          %1305 = vsyncadd [#allocation4], 0
          %s1307 = sshll.u32 [#allocation3], 4
          %s1308 = int_to_ptr.vmem [resolvable:$true] %s1307
          %s1309 = sshll.u32 %s6, 4
          %s1310 = int_to_ptr.hbm [resolvable:$true] %s1309
          %1312 = dma.vmem_to_hbm [thread:$0]  %s1308, 64, %s1310, [#allocation4]
        $region56: #{cru_forward.1} parent=39 // pred_fallthru
          _
        // Predicated region
        $region57: #{cru_forward.1} parent=39 // pred_check
          %p1313 = pneg %p142
        $region58: #{cru_forward.1} parent=39 // pred_check_branch
          %1315 = sbr.rel (%p1313) target = $region60
        $region59: #{cru_forward.1} parent=39 // pred_region
          _
        $region60: #{cru_forward.1} parent=39 // pred_fallthru
          _
        // Predicated region
        $region61: #{cru_forward.1} parent=39 // pred_check
          %p1316 = pneg %p163
        $region62: #{cru_forward.1} parent=39 // pred_check_branch
          %1318 = sbr.rel (%p1316) target = $region64
        $region63: #{cru_forward.1} parent=39 // pred_region
          %1320 = dma.done [#allocation4], 64
        $region64: #{cru_forward.1} parent=39 // pred_fallthru
          _
      $region40: #{cru_forward.1} parent=5 // pred_fallthru
        _
      %p1321 = scmp.le.s32.totalorder 2, %s14
      // Predicated region
      $region65: #{cru_forward.1} parent=5 // pred_check
        %p1322 = pneg %p1321
      $region66: #{cru_forward.1} parent=5 // pred_check_branch
        %1324 = sbr.rel (%p1322) target = $region68
      $region67: #{cru_forward.1} parent=5 // pred_region
        %s1325 = ssub.s32 %s14, 2
      $region68: #{cru_forward.1} parent=5 // pred_fallthru
        _
    $region6: #{cru_forward.1} parent=1 // loop_footer
      %s18 = sadd.s32 1, %s14
    $region7: #{cru_forward.1} parent=1 // loop_footer_branch
      %13 = sbr.rel target = $region3
    $region8: #{cru_forward.1} parent=1 // loop_exit
      _
    %1326 = vsyncpa [#allocation4], 1
    %s1327 = scalar_lea.sflag [#allocation4], 1
    %1328 = vsyncpa %s1327, 1

</llo_original>
